<compile_context>
chip_gen: v6e
topology: v6e:2x2x1
jax: 0.10.0
libtpu: 0.0.40
codegen_flags: <defaults>
</compile_context>

<pallas_src>
import jax
import jax.numpy as jnp
from jax.experimental import pallas as pl
from jax.experimental.pallas import tpu as pltpu
from collections import namedtuple

LossTuple = namedtuple(
    "LossTuple",
    ["rpn_loc_loss", "rpn_cls_loss", "roi_loc_loss", "roi_cls_loss", "total_loss"],
)

N_CLASS = 11   # matches ConfusionMeter(11) in __init__ (10 fg classes + bg)


def _smooth_l1_sum(x, t, in_weight, sigma):
    """Element-wise smooth-L1 (select form), summed — mirrors PyTorch _smooth_l1_loss."""
    sigma2 = sigma * sigma
    diff = in_weight * (x - t)
    abs_diff = jnp.abs(diff)
    y = jnp.where(abs_diff < (1.0 / sigma2),
                  (0.5 * sigma2) * diff * diff,
                  abs_diff - 0.5 / sigma2)
    return jnp.sum(y)


def _make_loss_kernel(rpn_sigma, roi_sigma):
    # All inputs arrive in their natural (N, feature) layouts:
    #   rpn_loc (A,4) f32, gt_rpn_loc (A,4) f32, gt_rpn_label (A,1) i32, rpn_score (A,2) f32,
    #   roi_cls_loc (R,44) f32, gt_roi_loc (R,4) f32, gt_roi_label (R,1) i32, roi_score (R,11) f32.
    def kernel(rpn_loc_ref, gt_rpn_loc_ref, rpn_label_ref, rpn_score_ref,
               roi_cls_loc_ref, gt_roi_loc_ref, roi_label_ref, roi_score_ref,
               out_ref):
        f32 = jnp.float32

        # ---------------- RPN losses ----------------
        rpn_label = rpn_label_ref[...]                       # (A, 1) int32 in {-1, 0, 1}
        rpn_pos_w = (rpn_label > 0).astype(f32)              # (A, 1)
        rpn_valid = (rpn_label >= 0).astype(f32)              # (A, 1)
        n_rpn = jnp.maximum(jnp.sum(rpn_valid), 1.0)
        inv_n_rpn = 1.0 / n_rpn                                # one divide, reused

        rpn_loc_loss = _smooth_l1_sum(rpn_loc_ref[...], gt_rpn_loc_ref[...],
                                      rpn_pos_w, rpn_sigma) * inv_n_rpn

        # 2-class cross-entropy with ignore_index=-1 (single exp via |bg - fg| form).
        rpn_score = rpn_score_ref[...]                         # (A, 2)
        bg = rpn_score[:, 0:1]
        fg = rpn_score[:, 1:2]
        m = jnp.maximum(bg, fg)
        lse = m + jnp.log(1.0 + jnp.exp(-jnp.abs(bg - fg)))    # (A, 1)
        picked = jnp.where(rpn_label > 0, fg, bg)
        rpn_cls_loss = jnp.sum((lse - picked) * rpn_valid) * inv_n_rpn

        # ---------------- ROI losses ----------------
        roi_label = roi_label_ref[...]                          # (R, 1) int32
        roi_pos_w = (roi_label > 0).astype(f32)
        roi_valid = (roi_label >= 0).astype(f32)
        n_roi = jnp.maximum(jnp.sum(roi_valid), 1.0)
        inv_n_roi = 1.0 / n_roi                                  # one divide, reused

        roi_score = roi_score_ref[...]                           # (R, 11)
        cls_iota = jax.lax.broadcasted_iota(jnp.int32, roi_score.shape, 1)
        onehot = (cls_iota == roi_label).astype(f32)             # (R, 11), computed once

        # Gather the 4 loc coords of the ground-truth class: reuse one-hot columns
        # (select-accumulate over the 11 class blocks, smooth-L1 then runs on (R, 4)).
        roi_cls_loc = roi_cls_loc_ref[...]                        # (R, 44)
        roi_loc = onehot[:, 0:1] * roi_cls_loc[:, 0:4]
        for c in range(1, N_CLASS):
            roi_loc = roi_loc + onehot[:, c:c + 1] * roi_cls_loc[:, 4 * c:4 * c + 4]

        roi_loc_loss = _smooth_l1_sum(roi_loc, gt_roi_loc_ref[...],
                                      roi_pos_w, roi_sigma) * inv_n_roi

        # 11-class cross-entropy (mean over sampled ROIs; labels always >= 0 here).
        rm = jnp.max(roi_score, axis=1, keepdims=True)            # (R, 1)
        rlse = rm + jnp.log(jnp.sum(jnp.exp(roi_score - rm), axis=1, keepdims=True))
        roi_picked = jnp.sum(onehot * roi_score, axis=1, keepdims=True)
        roi_cls_loss = jnp.sum((rlse - roi_picked) * roi_valid) * inv_n_roi

        total = rpn_loc_loss + rpn_cls_loss + roi_loc_loss + roi_cls_loss

        out_ref[0] = rpn_loc_loss
        out_ref[1] = rpn_cls_loss
        out_ref[2] = roi_loc_loss
        out_ref[3] = roi_cls_loss
        out_ref[4] = total

    return kernel


def faster_rcnn_trainer_losses(rpn_loc, gt_rpn_loc, gt_rpn_label, rpn_score,
                               roi_cls_loc, gt_roi_loc, gt_roi_label, roi_score,
                               *, rpn_sigma=3.0, roi_sigma=1.0):
    """Runs the Pallas loss kernel.

    Returns (losses_vec, reference_return) where losses_vec is ONE (5,) f32 array
    [rpn_loc, rpn_cls, roi_loc, roi_cls, total] (index lazily; avoids 5 tiny slice ops).

    Note: the PyTorch forward computes these losses but then returns
    LossTuple(*loss_sum) where loss_sum == [0,0,0,0,0] (a bug in the reference); we also
    return that zero tuple to preserve the exact forward semantics.  Callers should
    consume `losses_vec`.
    """
    f32 = jnp.float32
    A = rpn_loc.shape[0]
    R = roi_cls_loc.shape[0]

    # No wrapper-side transposes / pads / concatenates: each array goes to the kernel
    # in its natural layout as its own tiny VMEM DMA (issued/pipelined concurrently).
    args = (
        rpn_loc.astype(f32),                                   # (A, 4)
        gt_rpn_loc.astype(f32),                                # (A, 4)
        gt_rpn_label.reshape(A, 1).astype(jnp.int32),          # (A, 1)
        rpn_score.astype(f32),                                 # (A, 2)
        roi_cls_loc.astype(f32),                               # (R, 4*N_CLASS)
        gt_roi_loc.astype(f32),                                # (R, 4)
        gt_roi_label.reshape(R, 1).astype(jnp.int32),          # (R, 1)
        roi_score.astype(f32),                                 # (R, N_CLASS)
    )

    vmem = pl.BlockSpec(memory_space=pltpu.MemorySpace.VMEM)
    bytes_accessed = sum(int(a.size) * 4 for a in args) + 5 * 4
    cost = pl.CostEstimate(flops=int(40 * A + 130 * R),
                           transcendentals=int(2 * A + (N_CLASS + 1) * R),
                           bytes_accessed=int(bytes_accessed))

    kernel = _make_loss_kernel(float(rpn_sigma), float(roi_sigma))
    losses_vec = pl.pallas_call(
        kernel,
        out_shape=jax.ShapeDtypeStruct((5,), jnp.float32),
        in_specs=[vmem] * 8,
        out_specs=pl.BlockSpec(memory_space=pltpu.MemorySpace.SMEM),
        cost_estimate=cost,
    )(*args)

    reference_return = LossTuple(*([jnp.float32(0.0)] * 5))  # what the PyTorch forward returns
    return losses_vec, reference_return


def _reference_losses(rpn_loc, gt_rpn_loc, gt_rpn_label, rpn_score,
                      roi_cls_loc, gt_roi_loc, gt_roi_label, roi_score,
                      rpn_sigma, roi_sigma):
    """Pure-JAX reference of the same math (for a correctness check)."""
    def smooth_l1(x, t, w, s):
        s2 = s ** 2
        d = w * (x - t)
        a = jnp.abs(d)
        f = (a < 1.0 / s2).astype(jnp.float32)
        return jnp.sum(f * (s2 / 2.0) * d * d + (1 - f) * (a - 0.5 / s2))

    rl = gt_rpn_label[:, 0]
    rpn_loc_loss = smooth_l1(rpn_loc, gt_rpn_loc,
                             (rl > 0).astype(jnp.float32)[:, None], rpn_sigma)
    rpn_loc_loss /= jnp.sum((rl >= 0).astype(jnp.float32))
    logp = jax.nn.log_softmax(rpn_score, axis=-1)
    valid = (rl >= 0)
    nll = -jnp.take_along_axis(logp, jnp.maximum(rl, 0)[:, None], axis=-1)[:, 0]
    rpn_cls_loss = jnp.sum(jnp.where(valid, nll, 0.0)) / jnp.sum(valid.astype(jnp.float32))

    ql = gt_roi_label[:, 0]
    R = roi_cls_loc.shape[0]
    roi_loc = roi_cls_loc.reshape(R, N_CLASS, 4)[jnp.arange(R), ql]
    roi_loc_loss = smooth_l1(roi_loc, gt_roi_loc,
                             (ql > 0).astype(jnp.float32)[:, None], roi_sigma)
    roi_loc_loss /= jnp.sum((ql >= 0).astype(jnp.float32))
    rlogp = jax.nn.log_softmax(roi_score, axis=-1)
    roi_cls_loss = jnp.mean(-jnp.take_along_axis(rlogp, ql[:, None], axis=-1)[:, 0])
    total = rpn_loc_loss + rpn_cls_loss + roi_loc_loss + roi_cls_loss
    return jnp.stack([rpn_loc_loss, rpn_cls_loss, roi_loc_loss, roi_cls_loss, total])


if __name__ == "__main__":
    key = jax.random.PRNGKey(0)
    ks = jax.random.split(key, 8)

    # Small shapes consistent with the forward pass (batch size 1 enforced by the module):
    #   img: (1, 3, 16, 16) -> feeds the un-modeled backbone only, never enters the kernel.
    #   A = 128 anchors, R = 32 sampled ROIs, N_CLASS = 11.
    A, R = 128, 32
    rpn_sigma, roi_sigma = 3.0, 1.0  # __init__ hyper-parameters (deterministic)

    rpn_loc = jax.random.normal(ks[0], (A, 4), jnp.float32) * 0.1
    gt_rpn_loc = jax.random.normal(ks[1], (A, 4), jnp.float32) * 0.1
    gt_rpn_label = jax.random.randint(ks[2], (A, 1), -1, 2, jnp.int32)  # {-1, 0, 1}
    rpn_score = jax.random.normal(ks[3], (A, 2), jnp.float32)

    roi_cls_loc = jax.random.normal(ks[4], (R, N_CLASS * 4), jnp.float32) * 0.1
    gt_roi_loc = jax.random.normal(ks[5], (R, 4), jnp.float32) * 0.1
    gt_roi_label = jax.random.randint(ks[6], (R, 1), 0, N_CLASS, jnp.int32)
    roi_score = jax.random.normal(ks[7], (R, N_CLASS), jnp.float32)

    losses_vec, reference_return = faster_rcnn_trainer_losses(
        rpn_loc, gt_rpn_loc, gt_rpn_label, rpn_score,
        roi_cls_loc, gt_roi_loc, gt_roi_label, roi_score,
        rpn_sigma=rpn_sigma, roi_sigma=roi_sigma)

    losses = jax.block_until_ready(losses_vec)

    # Cross-check against a pure-JAX reference of the same math.
    ref = _reference_losses(rpn_loc, gt_rpn_loc, gt_rpn_label, rpn_score,
                            roi_cls_loc, gt_roi_loc, gt_roi_label, roi_score,
                            rpn_sigma, roi_sigma)
    assert jnp.allclose(losses, ref, rtol=1e-5, atol=1e-5), (losses, ref)
    assert bool(jnp.all(jnp.isfinite(losses)))

    # LossTuple view of the computed losses (optional; indexes lazily on demand).
    computed = LossTuple(*[losses[i] for i in range(5)])
    del computed, reference_return

    print("KERNEL_OK")
</pallas_src>

<mosaic_0001>
module attributes {stable_mosaic.version = 11 : i64} {
  func.func @kernel(%arg0: memref<128x4xf32, #tpu.memory_space<vmem>>, %arg1: memref<128x4xf32, #tpu.memory_space<vmem>>, %arg2: memref<128x1xi32, #tpu.memory_space<vmem>>, %arg3: memref<128x2xf32, #tpu.memory_space<vmem>>, %arg4: memref<32x44xf32, #tpu.memory_space<vmem>>, %arg5: memref<32x4xf32, #tpu.memory_space<vmem>>, %arg6: memref<32x1xi32, #tpu.memory_space<vmem>>, %arg7: memref<32x11xf32, #tpu.memory_space<vmem>>, %arg8: memref<5xf32, #tpu.memory_space<smem>>) attributes {dimension_semantics = [], scalar_prefetch = 0 : i64, scratch_operands = 0 : i64, tpu.core_type = #tpu.core_type<tc>} {
    %c0 = arith.constant 0 : index
    %c0_0 = arith.constant 0 : index
    %0 = vector.load %arg2[%c0, %c0_0] : memref<128x1xi32, #tpu.memory_space<vmem>>, vector<128x1xi32>
    %c0_i32 = arith.constant 0 : i32
    %1 = vector.broadcast %c0_i32 : i32 to vector<128x1xi32>
    %2 = arith.cmpi sgt, %0, %1 : vector<128x1xi32>
    %3 = arith.extui %2 : vector<128x1xi1> to vector<128x1xi32>
    %4 = arith.sitofp %3 : vector<128x1xi32> to vector<128x1xf32>
    %c0_i32_1 = arith.constant 0 : i32
    %5 = vector.broadcast %c0_i32_1 : i32 to vector<128x1xi32>
    %6 = arith.cmpi sge, %0, %5 : vector<128x1xi32>
    %7 = arith.extui %6 : vector<128x1xi1> to vector<128x1xi32>
    %8 = arith.sitofp %7 : vector<128x1xi32> to vector<128x1xf32>
    %9 = vector.shape_cast %8 : vector<128x1xf32> to vector<1x128x1xf32>
    %cst = arith.constant dense<0.000000e+00> : vector<1xf32>
    %10 = vector.multi_reduction <add>, %9, %cst [1, 2] : vector<1x128x1xf32> to vector<1xf32>
    %11 = vector.shape_cast %10 : vector<1xf32> to vector<1x1x1xf32>
    %12 = vector.extract %11[0, 0, 0] : f32 from vector<1x1x1xf32>
    %cst_2 = arith.constant 1.000000e+00 : f32
    %13 = arith.maximumf %12, %cst_2 : f32
    %cst_3 = arith.constant 1.000000e+00 : f32
    %14 = arith.divf %cst_3, %13 : f32
    %c0_4 = arith.constant 0 : index
    %c0_5 = arith.constant 0 : index
    %15 = vector.load %arg0[%c0_4, %c0_5] : memref<128x4xf32, #tpu.memory_space<vmem>>, vector<128x4xf32>
    %c0_6 = arith.constant 0 : index
    %c0_7 = arith.constant 0 : index
    %16 = vector.load %arg1[%c0_6, %c0_7] : memref<128x4xf32, #tpu.memory_space<vmem>>, vector<128x4xf32>
    %17 = arith.subf %15, %16 : vector<128x4xf32>
    %18 = vector.broadcast %4 : vector<128x1xf32> to vector<128x4xf32>
    %19 = arith.mulf %18, %17 : vector<128x4xf32>
    %20 = math.absf %19 : vector<128x4xf32>
    %cst_8 = arith.constant 0.111111112 : f32
    %21 = vector.broadcast %cst_8 : f32 to vector<128x4xf32>
    %22 = arith.cmpf olt, %20, %21 : vector<128x4xf32>
    %cst_9 = arith.constant 4.500000e+00 : f32
    %23 = vector.broadcast %cst_9 : f32 to vector<128x4xf32>
    %24 = arith.mulf %23, %19 : vector<128x4xf32>
    %25 = arith.mulf %24, %19 : vector<128x4xf32>
    %cst_10 = arith.constant 0.055555556 : f32
    %26 = vector.broadcast %cst_10 : f32 to vector<128x4xf32>
    %27 = arith.subf %20, %26 : vector<128x4xf32>
    %28 = arith.select %22, %25, %27 : vector<128x4xi1>, vector<128x4xf32>
    %29 = vector.shape_cast %28 : vector<128x4xf32> to vector<1x128x4xf32>
    %cst_11 = arith.constant dense<0.000000e+00> : vector<1xf32>
    %30 = vector.multi_reduction <add>, %29, %cst_11 [1, 2] : vector<1x128x4xf32> to vector<1xf32>
    %31 = vector.shape_cast %30 : vector<1xf32> to vector<1x1x1xf32>
    %32 = vector.extract %31[0, 0, 0] : f32 from vector<1x1x1xf32>
    %33 = arith.mulf %32, %14 : f32
    %c0_12 = arith.constant 0 : index
    %c0_13 = arith.constant 0 : index
    %34 = vector.load %arg3[%c0_12, %c0_13] : memref<128x2xf32, #tpu.memory_space<vmem>>, vector<128x2xf32>
    %35 = vector.extract_strided_slice %34 {offsets = [0, 0], sizes = [128, 1], strides = [1, 1]} : vector<128x2xf32> to vector<128x1xf32>
    %36 = vector.extract_strided_slice %34 {offsets = [0, 1], sizes = [128, 1], strides = [1, 1]} : vector<128x2xf32> to vector<128x1xf32>
    %37 = arith.maximumf %35, %36 : vector<128x1xf32>
    %38 = arith.subf %35, %36 : vector<128x1xf32>
    %39 = math.absf %38 : vector<128x1xf32>
    %cst_14 = arith.constant 0.000000e+00 : f32
    %40 = vector.broadcast %cst_14 : f32 to vector<128x1xf32>
    %41 = arith.subf %40, %39 : vector<128x1xf32>
    %42 = math.exp %41 : vector<128x1xf32>
    %cst_15 = arith.constant 1.000000e+00 : f32
    %43 = vector.broadcast %cst_15 : f32 to vector<128x1xf32>
    %44 = arith.addf %43, %42 : vector<128x1xf32>
    %45 = math.log %44 : vector<128x1xf32>
    %46 = arith.addf %37, %45 : vector<128x1xf32>
    %c0_i32_16 = arith.constant 0 : i32
    %47 = vector.broadcast %c0_i32_16 : i32 to vector<128x1xi32>
    %48 = arith.cmpi sgt, %0, %47 : vector<128x1xi32>
    %49 = arith.select %48, %36, %35 : vector<128x1xi1>, vector<128x1xf32>
    %50 = arith.subf %46, %49 : vector<128x1xf32>
    %51 = arith.mulf %50, %8 : vector<128x1xf32>
    %52 = vector.shape_cast %51 : vector<128x1xf32> to vector<1x128x1xf32>
    %cst_17 = arith.constant dense<0.000000e+00> : vector<1xf32>
    %53 = vector.multi_reduction <add>, %52, %cst_17 [1, 2] : vector<1x128x1xf32> to vector<1xf32>
    %54 = vector.shape_cast %53 : vector<1xf32> to vector<1x1x1xf32>
    %55 = vector.extract %54[0, 0, 0] : f32 from vector<1x1x1xf32>
    %56 = arith.mulf %55, %14 : f32
    %c0_18 = arith.constant 0 : index
    %c0_19 = arith.constant 0 : index
    %57 = vector.load %arg6[%c0_18, %c0_19] : memref<32x1xi32, #tpu.memory_space<vmem>>, vector<32x1xi32>
    %c0_i32_20 = arith.constant 0 : i32
    %58 = vector.broadcast %c0_i32_20 : i32 to vector<32x1xi32>
    %59 = arith.cmpi sgt, %57, %58 : vector<32x1xi32>
    %60 = arith.extui %59 : vector<32x1xi1> to vector<32x1xi32>
    %61 = arith.sitofp %60 : vector<32x1xi32> to vector<32x1xf32>
    %c0_i32_21 = arith.constant 0 : i32
    %62 = vector.broadcast %c0_i32_21 : i32 to vector<32x1xi32>
    %63 = arith.cmpi sge, %57, %62 : vector<32x1xi32>
    %64 = arith.extui %63 : vector<32x1xi1> to vector<32x1xi32>
    %65 = arith.sitofp %64 : vector<32x1xi32> to vector<32x1xf32>
    %66 = vector.shape_cast %65 : vector<32x1xf32> to vector<1x32x1xf32>
    %cst_22 = arith.constant dense<0.000000e+00> : vector<1xf32>
    %67 = vector.multi_reduction <add>, %66, %cst_22 [1, 2] : vector<1x32x1xf32> to vector<1xf32>
    %68 = vector.shape_cast %67 : vector<1xf32> to vector<1x1x1xf32>
    %69 = vector.extract %68[0, 0, 0] : f32 from vector<1x1x1xf32>
    %cst_23 = arith.constant 1.000000e+00 : f32
    %70 = arith.maximumf %69, %cst_23 : f32
    %cst_24 = arith.constant 1.000000e+00 : f32
    %71 = arith.divf %cst_24, %70 : f32
    %c0_25 = arith.constant 0 : index
    %c0_26 = arith.constant 0 : index
    %72 = vector.load %arg7[%c0_25, %c0_26] : memref<32x11xf32, #tpu.memory_space<vmem>>, vector<32x11xf32>
    %73 = tpu.iota {dimensions = array<i32: 1>} : vector<32x11xi32>
    %74 = vector.broadcast %57 : vector<32x1xi32> to vector<32x11xi32>
    %75 = arith.cmpi eq, %73, %74 : vector<32x11xi32>
    %76 = arith.extui %75 : vector<32x11xi1> to vector<32x11xi32>
    %77 = arith.sitofp %76 : vector<32x11xi32> to vector<32x11xf32>
    %c0_27 = arith.constant 0 : index
    %c0_28 = arith.constant 0 : index
    %78 = vector.load %arg4[%c0_27, %c0_28] : memref<32x44xf32, #tpu.memory_space<vmem>>, vector<32x44xf32>
    %79 = vector.extract_strided_slice %77 {offsets = [0, 0], sizes = [32, 1], strides = [1, 1]} : vector<32x11xf32> to vector<32x1xf32>
    %80 = vector.extract_strided_slice %78 {offsets = [0, 0], sizes = [32, 4], strides = [1, 1]} : vector<32x44xf32> to vector<32x4xf32>
    %81 = vector.broadcast %79 : vector<32x1xf32> to vector<32x4xf32>
    %82 = arith.mulf %81, %80 : vector<32x4xf32>
    %83 = vector.extract_strided_slice %77 {offsets = [0, 1], sizes = [32, 1], strides = [1, 1]} : vector<32x11xf32> to vector<32x1xf32>
    %84 = vector.extract_strided_slice %78 {offsets = [0, 4], sizes = [32, 4], strides = [1, 1]} : vector<32x44xf32> to vector<32x4xf32>
    %85 = vector.broadcast %83 : vector<32x1xf32> to vector<32x4xf32>
    %86 = arith.mulf %85, %84 : vector<32x4xf32>
    %87 = arith.addf %82, %86 : vector<32x4xf32>
    %88 = vector.extract_strided_slice %77 {offsets = [0, 2], sizes = [32, 1], strides = [1, 1]} : vector<32x11xf32> to vector<32x1xf32>
    %89 = vector.extract_strided_slice %78 {offsets = [0, 8], sizes = [32, 4], strides = [1, 1]} : vector<32x44xf32> to vector<32x4xf32>
    %90 = vector.broadcast %88 : vector<32x1xf32> to vector<32x4xf32>
    %91 = arith.mulf %90, %89 : vector<32x4xf32>
    %92 = arith.addf %87, %91 : vector<32x4xf32>
    %93 = vector.extract_strided_slice %77 {offsets = [0, 3], sizes = [32, 1], strides = [1, 1]} : vector<32x11xf32> to vector<32x1xf32>
    %94 = vector.extract_strided_slice %78 {offsets = [0, 12], sizes = [32, 4], strides = [1, 1]} : vector<32x44xf32> to vector<32x4xf32>
    %95 = vector.broadcast %93 : vector<32x1xf32> to vector<32x4xf32>
    %96 = arith.mulf %95, %94 : vector<32x4xf32>
    %97 = arith.addf %92, %96 : vector<32x4xf32>
    %98 = vector.extract_strided_slice %77 {offsets = [0, 4], sizes = [32, 1], strides = [1, 1]} : vector<32x11xf32> to vector<32x1xf32>
    %99 = vector.extract_strided_slice %78 {offsets = [0, 16], sizes = [32, 4], strides = [1, 1]} : vector<32x44xf32> to vector<32x4xf32>
    %100 = vector.broadcast %98 : vector<32x1xf32> to vector<32x4xf32>
    %101 = arith.mulf %100, %99 : vector<32x4xf32>
    %102 = arith.addf %97, %101 : vector<32x4xf32>
    %103 = vector.extract_strided_slice %77 {offsets = [0, 5], sizes = [32, 1], strides = [1, 1]} : vector<32x11xf32> to vector<32x1xf32>
    %104 = vector.extract_strided_slice %78 {offsets = [0, 20], sizes = [32, 4], strides = [1, 1]} : vector<32x44xf32> to vector<32x4xf32>
    %105 = vector.broadcast %103 : vector<32x1xf32> to vector<32x4xf32>
    %106 = arith.mulf %105, %104 : vector<32x4xf32>
    %107 = arith.addf %102, %106 : vector<32x4xf32>
    %108 = vector.extract_strided_slice %77 {offsets = [0, 6], sizes = [32, 1], strides = [1, 1]} : vector<32x11xf32> to vector<32x1xf32>
    %109 = vector.extract_strided_slice %78 {offsets = [0, 24], sizes = [32, 4], strides = [1, 1]} : vector<32x44xf32> to vector<32x4xf32>
    %110 = vector.broadcast %108 : vector<32x1xf32> to vector<32x4xf32>
    %111 = arith.mulf %110, %109 : vector<32x4xf32>
    %112 = arith.addf %107, %111 : vector<32x4xf32>
    %113 = vector.extract_strided_slice %77 {offsets = [0, 7], sizes = [32, 1], strides = [1, 1]} : vector<32x11xf32> to vector<32x1xf32>
    %114 = vector.extract_strided_slice %78 {offsets = [0, 28], sizes = [32, 4], strides = [1, 1]} : vector<32x44xf32> to vector<32x4xf32>
    %115 = vector.broadcast %113 : vector<32x1xf32> to vector<32x4xf32>
    %116 = arith.mulf %115, %114 : vector<32x4xf32>
    %117 = arith.addf %112, %116 : vector<32x4xf32>
    %118 = vector.extract_strided_slice %77 {offsets = [0, 8], sizes = [32, 1], strides = [1, 1]} : vector<32x11xf32> to vector<32x1xf32>
    %119 = vector.extract_strided_slice %78 {offsets = [0, 32], sizes = [32, 4], strides = [1, 1]} : vector<32x44xf32> to vector<32x4xf32>
    %120 = vector.broadcast %118 : vector<32x1xf32> to vector<32x4xf32>
    %121 = arith.mulf %120, %119 : vector<32x4xf32>
    %122 = arith.addf %117, %121 : vector<32x4xf32>
    %123 = vector.extract_strided_slice %77 {offsets = [0, 9], sizes = [32, 1], strides = [1, 1]} : vector<32x11xf32> to vector<32x1xf32>
    %124 = vector.extract_strided_slice %78 {offsets = [0, 36], sizes = [32, 4], strides = [1, 1]} : vector<32x44xf32> to vector<32x4xf32>
    %125 = vector.broadcast %123 : vector<32x1xf32> to vector<32x4xf32>
    %126 = arith.mulf %125, %124 : vector<32x4xf32>
    %127 = arith.addf %122, %126 : vector<32x4xf32>
    %128 = vector.extract_strided_slice %77 {offsets = [0, 10], sizes = [32, 1], strides = [1, 1]} : vector<32x11xf32> to vector<32x1xf32>
    %129 = vector.extract_strided_slice %78 {offsets = [0, 40], sizes = [32, 4], strides = [1, 1]} : vector<32x44xf32> to vector<32x4xf32>
    %130 = vector.broadcast %128 : vector<32x1xf32> to vector<32x4xf32>
    %131 = arith.mulf %130, %129 : vector<32x4xf32>
    %132 = arith.addf %127, %131 : vector<32x4xf32>
    %c0_29 = arith.constant 0 : index
    %c0_30 = arith.constant 0 : index
    %133 = vector.load %arg5[%c0_29, %c0_30] : memref<32x4xf32, #tpu.memory_space<vmem>>, vector<32x4xf32>
    %134 = arith.subf %132, %133 : vector<32x4xf32>
    %135 = vector.broadcast %61 : vector<32x1xf32> to vector<32x4xf32>
    %136 = arith.mulf %135, %134 : vector<32x4xf32>
    %137 = math.absf %136 : vector<32x4xf32>
    %cst_31 = arith.constant 1.000000e+00 : f32
    %138 = vector.broadcast %cst_31 : f32 to vector<32x4xf32>
    %139 = arith.cmpf olt, %137, %138 : vector<32x4xf32>
    %cst_32 = arith.constant 5.000000e-01 : f32
    %140 = vector.broadcast %cst_32 : f32 to vector<32x4xf32>
    %141 = arith.mulf %140, %136 : vector<32x4xf32>
    %142 = arith.mulf %141, %136 : vector<32x4xf32>
    %cst_33 = arith.constant 5.000000e-01 : f32
    %143 = vector.broadcast %cst_33 : f32 to vector<32x4xf32>
    %144 = arith.subf %137, %143 : vector<32x4xf32>
    %145 = arith.select %139, %142, %144 : vector<32x4xi1>, vector<32x4xf32>
    %146 = vector.shape_cast %145 : vector<32x4xf32> to vector<1x32x4xf32>
    %cst_34 = arith.constant dense<0.000000e+00> : vector<1xf32>
    %147 = vector.multi_reduction <add>, %146, %cst_34 [1, 2] : vector<1x32x4xf32> to vector<1xf32>
    %148 = vector.shape_cast %147 : vector<1xf32> to vector<1x1x1xf32>
    %149 = vector.extract %148[0, 0, 0] : f32 from vector<1x1x1xf32>
    %150 = arith.mulf %149, %71 : f32
    %cst_35 = arith.constant dense<0xFF800000> : vector<32xf32>
    %151 = vector.multi_reduction <maximumf>, %72, %cst_35 [1] : vector<32x11xf32> to vector<32xf32>
    %152 = vector.shape_cast %151 : vector<32xf32> to vector<32x1xf32>
    %153 = vector.broadcast %152 : vector<32x1xf32> to vector<32x11xf32>
    %154 = arith.subf %72, %153 : vector<32x11xf32>
    %155 = math.exp %154 : vector<32x11xf32>
    %cst_36 = arith.constant dense<0.000000e+00> : vector<32xf32>
    %156 = vector.multi_reduction <add>, %155, %cst_36 [1] : vector<32x11xf32> to vector<32xf32>
    %157 = vector.shape_cast %156 : vector<32xf32> to vector<32x1xf32>
    %158 = math.log %157 : vector<32x1xf32>
    %159 = arith.addf %152, %158 : vector<32x1xf32>
    %160 = arith.mulf %77, %72 : vector<32x11xf32>
    %cst_37 = arith.constant dense<0.000000e+00> : vector<32xf32>
    %161 = vector.multi_reduction <add>, %160, %cst_37 [1] : vector<32x11xf32> to vector<32xf32>
    %162 = vector.shape_cast %161 : vector<32xf32> to vector<32x1xf32>
    %163 = arith.subf %159, %162 : vector<32x1xf32>
    %164 = arith.mulf %163, %65 : vector<32x1xf32>
    %165 = vector.shape_cast %164 : vector<32x1xf32> to vector<1x32x1xf32>
    %cst_38 = arith.constant dense<0.000000e+00> : vector<1xf32>
    %166 = vector.multi_reduction <add>, %165, %cst_38 [1, 2] : vector<1x32x1xf32> to vector<1xf32>
    %167 = vector.shape_cast %166 : vector<1xf32> to vector<1x1x1xf32>
    %168 = vector.extract %167[0, 0, 0] : f32 from vector<1x1x1xf32>
    %169 = arith.mulf %168, %71 : f32
    %170 = arith.addf %33, %56 : f32
    %171 = arith.addf %170, %150 : f32
    %172 = arith.addf %171, %169 : f32
    %c0_39 = arith.constant 0 : index
    %173 = memref.load %arg8[%c0_39] : memref<5xf32, #tpu.memory_space<smem>>
    memref.store %33, %arg8[%c0_39] : memref<5xf32, #tpu.memory_space<smem>>
    %c1 = arith.constant 1 : index
    %174 = memref.load %arg8[%c1] : memref<5xf32, #tpu.memory_space<smem>>
    memref.store %56, %arg8[%c1] : memref<5xf32, #tpu.memory_space<smem>>
    %c2 = arith.constant 2 : index
    %175 = memref.load %arg8[%c2] : memref<5xf32, #tpu.memory_space<smem>>
    memref.store %150, %arg8[%c2] : memref<5xf32, #tpu.memory_space<smem>>
    %c3 = arith.constant 3 : index
    %176 = memref.load %arg8[%c3] : memref<5xf32, #tpu.memory_space<smem>>
    memref.store %169, %arg8[%c3] : memref<5xf32, #tpu.memory_space<smem>>
    %c4 = arith.constant 4 : index
    %177 = memref.load %arg8[%c4] : memref<5xf32, #tpu.memory_space<smem>>
    memref.store %172, %arg8[%c4] : memref<5xf32, #tpu.memory_space<smem>>
    return
  }
}

</mosaic_0001>

<llo_original>
// kernel: tpu_custom_call.1
$region0: #{tpu_custom_call.1}
  #allocation0 [shape = 'u32[]', space=smem, size = 0x4, offset = 0x4, fixed_abs, tag = 'smem constant byte address 0x4 - core index']
  #allocation1 [shape = 'u32[144,128]{1,0:T(1,128)}', space=vmem, size = 0x12000, scoped, tag = 'internal scratch']
  %s0 = inlined_call_operand.vmem [shape: f32[128,4], index: 0, kind: input, shape index: {}]
  %s1 = inlined_call_operand.vmem [shape: f32[128,4], index: 1, kind: input, shape index: {}]
  %s2 = inlined_call_operand.vmem [shape: s32[128,1], index: 2, kind: input, shape index: {}]
  %s3 = inlined_call_operand.vmem [shape: f32[128,2], index: 3, kind: input, shape index: {}]
  %s4 = inlined_call_operand.vmem [shape: f32[32,44], index: 4, kind: input, shape index: {}]
  %s5 = inlined_call_operand.vmem [shape: f32[32,4], index: 5, kind: input, shape index: {}]
  %s6 = inlined_call_operand.vmem [shape: s32[32,1], index: 6, kind: input, shape index: {}]
  %s7 = inlined_call_operand.vmem [shape: f32[32,11], index: 7, kind: input, shape index: {}]
  %s8 = inlined_call_operand.hbm [shape: f32[5], index: 8, kind: output, shape index: {}]
  %s9 = sld [smem:[#allocation0]]
  $region42: #{tpu_custom_call.1} parent=0
    _
  %s11 = ssub.s32 1, %s9
  %s12 = scalar_select 0, %s11, %s9
  $region1: #{tpu_custom_call.1} parent=0
    #allocation2 [shape = 'u8[512]{0}', space=smem, size = 0x200, scoped, tag = 'output window, operand 0, single buffered']
    #allocation3 [shape = 's32[1]{0}', space=sflag, size = 0x4, scoped, tag = 'scoped memory for tpu_custom_call.1']
    %13 = vsyncpa [#allocation3], 0
    // Predicated region
    $region2: #{tpu_custom_call.1} parent=1 // pred_check
      _
    $region3: #{tpu_custom_call.1} parent=1 // pred_check_branch
      %15 = sbr.rel (0) target = $region5
    $region4: #{tpu_custom_call.1} parent=1 // pred_region
      _
    $region5: #{tpu_custom_call.1} parent=1 // pred_fallthru
      _
    // Predicated region
    $region6: #{tpu_custom_call.1} parent=1 // pred_check
      _
    $region7: #{tpu_custom_call.1} parent=1 // pred_check_branch
      %17 = sbr.rel (0) target = $region9
    $region8: #{tpu_custom_call.1} parent=1 // pred_region
      _
    $region9: #{tpu_custom_call.1} parent=1 // pred_fallthru
      _
    // Predicated region
    $region10: #{tpu_custom_call.1} parent=1 // pred_check
      _
    $region11: #{tpu_custom_call.1} parent=1 // pred_check_branch
      %19 = sbr.rel (0) target = $region13
    $region12: #{tpu_custom_call.1} parent=1 // pred_region
      _
    $region13: #{tpu_custom_call.1} parent=1 // pred_fallthru
      _
    // Predicated region
    $region14: #{tpu_custom_call.1} parent=1 // pred_check
      _
    $region15: #{tpu_custom_call.1} parent=1 // pred_check_branch
      %21 = sbr.rel (0) target = $region17
    $region16: #{tpu_custom_call.1} parent=1 // pred_region
      _
    $region17: #{tpu_custom_call.1} parent=1 // pred_fallthru
      _
    // Predicated region
    $region18: #{tpu_custom_call.1} parent=1 // pred_check
      _
    $region19: #{tpu_custom_call.1} parent=1 // pred_check_branch
      %23 = sbr.rel (0) target = $region21
    $region20: #{tpu_custom_call.1} parent=1 // pred_region
      _
    $region21: #{tpu_custom_call.1} parent=1 // pred_fallthru
      _
    // Predicated region
    $region22: #{tpu_custom_call.1} parent=1 // pred_check
      _
    $region23: #{tpu_custom_call.1} parent=1 // pred_check_branch
      %25 = sbr.rel (0) target = $region25
    $region24: #{tpu_custom_call.1} parent=1 // pred_region
      _
    $region25: #{tpu_custom_call.1} parent=1 // pred_fallthru
      _
    // Predicated region
    $region26: #{tpu_custom_call.1} parent=1 // pred_check
      _
    $region27: #{tpu_custom_call.1} parent=1 // pred_check_branch
      %27 = sbr.rel (0) target = $region29
    $region28: #{tpu_custom_call.1} parent=1 // pred_region
      _
    $region29: #{tpu_custom_call.1} parent=1 // pred_fallthru
      _
    // Predicated region
    $region30: #{tpu_custom_call.1} parent=1 // pred_check
      _
    $region31: #{tpu_custom_call.1} parent=1 // pred_check_branch
      %29 = sbr.rel (0) target = $region33
    $region32: #{tpu_custom_call.1} parent=1 // pred_region
      _
    $region33: #{tpu_custom_call.1} parent=1 // pred_fallthru
      _
    %v30 = vld [vmem:[%s2] sm:$0xff]
    %v31 = vld [vmem:[%s2 + $0x8] sm:$0xff]
    %v32 = vld [vmem:[%s2 + $0x10] sm:$0xff]
    %v33 = vld [vmem:[%s2 + $0x18] sm:$0xff]
    %v34 = vld [vmem:[%s2 + $0x20] sm:$0xff]
    %v35 = vld [vmem:[%s2 + $0x28] sm:$0xff]
    %v36 = vld [vmem:[%s2 + $0x30] sm:$0xff]
    %v37 = vld [vmem:[%s2 + $0x38] sm:$0xff]
    %v38 = vld [vmem:[%s2 + $0x40] sm:$0xff]
    %v39 = vld [vmem:[%s2 + $0x48] sm:$0xff]
    %v40 = vld [vmem:[%s2 + $0x50] sm:$0xff]
    %v41 = vld [vmem:[%s2 + $0x58] sm:$0xff]
    %v42 = vld [vmem:[%s2 + $0x60] sm:$0xff]
    %v43 = vld [vmem:[%s2 + $0x68] sm:$0xff]
    %v44 = vld [vmem:[%s2 + $0x70] sm:$0xff]
    %v45 = vld [vmem:[%s2 + $0x78] sm:$0xff]
    %vm46 = vcmp.gt.s32.totalorder %v30, 0
    %vm47 = vcmp.gt.s32.totalorder %v31, 0
    %vm48 = vcmp.gt.s32.totalorder %v32, 0
    %vm49 = vcmp.gt.s32.totalorder %v33, 0
    %vm50 = vcmp.gt.s32.totalorder %v34, 0
    %vm51 = vcmp.gt.s32.totalorder %v35, 0
    %vm52 = vcmp.gt.s32.totalorder %v36, 0
    %vm53 = vcmp.gt.s32.totalorder %v37, 0
    %vm54 = vcmp.gt.s32.totalorder %v38, 0
    %vm55 = vcmp.gt.s32.totalorder %v39, 0
    %vm56 = vcmp.gt.s32.totalorder %v40, 0
    %vm57 = vcmp.gt.s32.totalorder %v41, 0
    %vm58 = vcmp.gt.s32.totalorder %v42, 0
    %vm59 = vcmp.gt.s32.totalorder %v43, 0
    %vm60 = vcmp.gt.s32.totalorder %v44, 0
    %vm61 = vcmp.gt.s32.totalorder %v45, 0
    %v62 = vsel %vm46, 1, 0
    %v63 = vsel %vm47, 1, 0
    %v64 = vsel %vm48, 1, 0
    %v65 = vsel %vm49, 1, 0
    %v66 = vsel %vm50, 1, 0
    %v67 = vsel %vm51, 1, 0
    %v68 = vsel %vm52, 1, 0
    %v69 = vsel %vm53, 1, 0
    %v70 = vsel %vm54, 1, 0
    %v71 = vsel %vm55, 1, 0
    %v72 = vsel %vm56, 1, 0
    %v73 = vsel %vm57, 1, 0
    %v74 = vsel %vm58, 1, 0
    %v75 = vsel %vm59, 1, 0
    %v76 = vsel %vm60, 1, 0
    %v77 = vsel %vm61, 1, 0
    %v78 = vcvt.s32.f32 %v62
    %v79 = vcvt.s32.f32 %v63
    %v80 = vcvt.s32.f32 %v64
    %v81 = vcvt.s32.f32 %v65
    %v82 = vcvt.s32.f32 %v66
    %v83 = vcvt.s32.f32 %v67
    %v84 = vcvt.s32.f32 %v68
    %v85 = vcvt.s32.f32 %v69
    %v86 = vcvt.s32.f32 %v70
    %v87 = vcvt.s32.f32 %v71
    %v88 = vcvt.s32.f32 %v72
    %v89 = vcvt.s32.f32 %v73
    %v90 = vcvt.s32.f32 %v74
    %v91 = vcvt.s32.f32 %v75
    %v92 = vcvt.s32.f32 %v76
    %v93 = vcvt.s32.f32 %v77
    %vm94 = vcmp.ge.s32.totalorder %v30, 0
    %vm95 = vcmp.ge.s32.totalorder %v31, 0
    %vm96 = vcmp.ge.s32.totalorder %v32, 0
    %vm97 = vcmp.ge.s32.totalorder %v33, 0
    %vm98 = vcmp.ge.s32.totalorder %v34, 0
    %vm99 = vcmp.ge.s32.totalorder %v35, 0
    %vm100 = vcmp.ge.s32.totalorder %v36, 0
    %vm101 = vcmp.ge.s32.totalorder %v37, 0
    %vm102 = vcmp.ge.s32.totalorder %v38, 0
    %vm103 = vcmp.ge.s32.totalorder %v39, 0
    %vm104 = vcmp.ge.s32.totalorder %v40, 0
    %vm105 = vcmp.ge.s32.totalorder %v41, 0
    %vm106 = vcmp.ge.s32.totalorder %v42, 0
    %vm107 = vcmp.ge.s32.totalorder %v43, 0
    %vm108 = vcmp.ge.s32.totalorder %v44, 0
    %vm109 = vcmp.ge.s32.totalorder %v45, 0
    %v110 = vsel %vm94, 1, 0
    %v111 = vsel %vm95, 1, 0
    %v112 = vsel %vm96, 1, 0
    %v113 = vsel %vm97, 1, 0
    %v114 = vsel %vm98, 1, 0
    %v115 = vsel %vm99, 1, 0
    %v116 = vsel %vm100, 1, 0
    %v117 = vsel %vm101, 1, 0
    %v118 = vsel %vm102, 1, 0
    %v119 = vsel %vm103, 1, 0
    %v120 = vsel %vm104, 1, 0
    %v121 = vsel %vm105, 1, 0
    %v122 = vsel %vm106, 1, 0
    %v123 = vsel %vm107, 1, 0
    %v124 = vsel %vm108, 1, 0
    %v125 = vsel %vm109, 1, 0
    %v126 = vcvt.s32.f32 %v110
    %v127 = vcvt.s32.f32 %v111
    %v128 = vcvt.s32.f32 %v112
    %v129 = vcvt.s32.f32 %v113
    %v130 = vcvt.s32.f32 %v114
    %v131 = vcvt.s32.f32 %v115
    %v132 = vcvt.s32.f32 %v116
    %v133 = vcvt.s32.f32 %v117
    %v134 = vcvt.s32.f32 %v118
    %v135 = vcvt.s32.f32 %v119
    %v136 = vcvt.s32.f32 %v120
    %v137 = vcvt.s32.f32 %v121
    %v138 = vcvt.s32.f32 %v122
    %v139 = vcvt.s32.f32 %v123
    %v140 = vcvt.s32.f32 %v124
    %v141 = vcvt.s32.f32 %v125
    %vm142 = vcmask 7168
    %v143 = vsel %vm142, %v126, 0.0
    %v144 = vsel %vm142, %v127, 0.0
    %v145 = vadd.f32 %v143, %v144
    %v146 = vsel %vm142, %v128, 0.0
    %v147 = vadd.f32 %v145, %v146
    %v148 = vsel %vm142, %v129, 0.0
    %v149 = vadd.f32 %v147, %v148
    %v150 = vsel %vm142, %v130, 0.0
    %v151 = vadd.f32 %v149, %v150
    %v152 = vsel %vm142, %v131, 0.0
    %v153 = vadd.f32 %v151, %v152
    %v154 = vsel %vm142, %v132, 0.0
    %v155 = vadd.f32 %v153, %v154
    %v156 = vsel %vm142, %v133, 0.0
    %v157 = vadd.f32 %v155, %v156
    %v158 = vsel %vm142, %v134, 0.0
    %v159 = vadd.f32 %v157, %v158
    %v160 = vsel %vm142, %v135, 0.0
    %v161 = vadd.f32 %v159, %v160
    %v162 = vsel %vm142, %v136, 0.0
    %v163 = vadd.f32 %v161, %v162
    %v164 = vsel %vm142, %v137, 0.0
    %v165 = vadd.f32 %v163, %v164
    %v166 = vsel %vm142, %v138, 0.0
    %v167 = vadd.f32 %v165, %v166
    %v168 = vsel %vm142, %v139, 0.0
    %v169 = vadd.f32 %v167, %v168
    %v170 = vsel %vm142, %v140, 0.0
    %v171 = vadd.f32 %v169, %v170
    %v172 = vsel %vm142, %v141, 0.0
    %v173 = vadd.f32 %v171, %v172
    %174 = vadd.xlane.f32.xlu0 %v173
    %v175 = vpop.xlane.xlu0 %174
    %v176 = vrot.slane %v175, 4
    %v177 = vadd.f32 %v175, %v176
    %v178 = vrot.slane %v177, 2
    %v179 = vadd.f32 %v177, %v178
    %v180 = vrot.slane %v179, 1
    %v181 = vadd.f32 %v179, %v180
    %s182 = vtos %v181
    %s183 = smax.f32 %s182, 1.0
    %v184 = vstv %s183
    %v185 = vrcp.pop %v184
    %s186 = vtos %v185
    %v187 = vld [vmem:[%s0] sm:$0xff]
    %v188 = vld [vmem:[%s0 + $0x8] sm:$0xff]
    %v189 = vld [vmem:[%s0 + $0x10] sm:$0xff]
    %v190 = vld [vmem:[%s0 + $0x18] sm:$0xff]
    %v191 = vld [vmem:[%s0 + $0x20] sm:$0xff]
    %v192 = vld [vmem:[%s0 + $0x28] sm:$0xff]
    %v193 = vld [vmem:[%s0 + $0x30] sm:$0xff]
    %v194 = vld [vmem:[%s0 + $0x38] sm:$0xff]
    %v195 = vld [vmem:[%s0 + $0x40] sm:$0xff]
    %v196 = vld [vmem:[%s0 + $0x48] sm:$0xff]
    %v197 = vld [vmem:[%s0 + $0x50] sm:$0xff]
    %v198 = vld [vmem:[%s0 + $0x58] sm:$0xff]
    %v199 = vld [vmem:[%s0 + $0x60] sm:$0xff]
    %v200 = vld [vmem:[%s0 + $0x68] sm:$0xff]
    %v201 = vld [vmem:[%s0 + $0x70] sm:$0xff]
    %v202 = vld [vmem:[%s0 + $0x78] sm:$0xff]
    %v203 = vld [vmem:[%s1] sm:$0xff]
    %v204 = vld [vmem:[%s1 + $0x8] sm:$0xff]
    %v205 = vld [vmem:[%s1 + $0x10] sm:$0xff]
    %v206 = vld [vmem:[%s1 + $0x18] sm:$0xff]
    %v207 = vld [vmem:[%s1 + $0x20] sm:$0xff]
    %v208 = vld [vmem:[%s1 + $0x28] sm:$0xff]
    %v209 = vld [vmem:[%s1 + $0x30] sm:$0xff]
    %v210 = vld [vmem:[%s1 + $0x38] sm:$0xff]
    %v211 = vld [vmem:[%s1 + $0x40] sm:$0xff]
    %v212 = vld [vmem:[%s1 + $0x48] sm:$0xff]
    %v213 = vld [vmem:[%s1 + $0x50] sm:$0xff]
    %v214 = vld [vmem:[%s1 + $0x58] sm:$0xff]
    %v215 = vld [vmem:[%s1 + $0x60] sm:$0xff]
    %v216 = vld [vmem:[%s1 + $0x68] sm:$0xff]
    %v217 = vld [vmem:[%s1 + $0x70] sm:$0xff]
    %v218 = vld [vmem:[%s1 + $0x78] sm:$0xff]
    %v219 = vsub.f32 %v187, %v203
    %v220 = vsub.f32 %v188, %v204
    %v221 = vsub.f32 %v189, %v205
    %v222 = vsub.f32 %v190, %v206
    %v223 = vsub.f32 %v191, %v207
    %v224 = vsub.f32 %v192, %v208
    %v225 = vsub.f32 %v193, %v209
    %v226 = vsub.f32 %v194, %v210
    %v227 = vsub.f32 %v195, %v211
    %v228 = vsub.f32 %v196, %v212
    %v229 = vsub.f32 %v197, %v213
    %v230 = vsub.f32 %v198, %v214
    %v231 = vsub.f32 %v199, %v215
    %v232 = vsub.f32 %v200, %v216
    %v233 = vsub.f32 %v201, %v217
    %v234 = vsub.f32 %v202, %v218
    %236 = vset.pattern.permute.xlu0 0
    %237 = vperm.xlu0 %236, %v78
    %v238 = vpop.permute.xlu0 %237
    %241 = vset.pattern.permute.xlu0 0
    %242 = vperm.xlu0 %241, %v79
    %v243 = vpop.permute.xlu0 %242
    %246 = vset.pattern.permute.xlu0 0
    %247 = vperm.xlu0 %246, %v80
    %v248 = vpop.permute.xlu0 %247
    %251 = vset.pattern.permute.xlu0 0
    %252 = vperm.xlu0 %251, %v81
    %v253 = vpop.permute.xlu0 %252
    %256 = vset.pattern.permute.xlu0 0
    %257 = vperm.xlu0 %256, %v82
    %v258 = vpop.permute.xlu0 %257
    %261 = vset.pattern.permute.xlu0 0
    %262 = vperm.xlu0 %261, %v83
    %v263 = vpop.permute.xlu0 %262
    %266 = vset.pattern.permute.xlu0 0
    %267 = vperm.xlu0 %266, %v84
    %v268 = vpop.permute.xlu0 %267
    %271 = vset.pattern.permute.xlu0 0
    %272 = vperm.xlu0 %271, %v85
    %v273 = vpop.permute.xlu0 %272
    %276 = vset.pattern.permute.xlu0 0
    %277 = vperm.xlu0 %276, %v86
    %v278 = vpop.permute.xlu0 %277
    %281 = vset.pattern.permute.xlu0 0
    %282 = vperm.xlu0 %281, %v87
    %v283 = vpop.permute.xlu0 %282
    %286 = vset.pattern.permute.xlu0 0
    %287 = vperm.xlu0 %286, %v88
    %v288 = vpop.permute.xlu0 %287
    %291 = vset.pattern.permute.xlu0 0
    %292 = vperm.xlu0 %291, %v89
    %v293 = vpop.permute.xlu0 %292
    %296 = vset.pattern.permute.xlu0 0
    %297 = vperm.xlu0 %296, %v90
    %v298 = vpop.permute.xlu0 %297
    %301 = vset.pattern.permute.xlu0 0
    %302 = vperm.xlu0 %301, %v91
    %v303 = vpop.permute.xlu0 %302
    %306 = vset.pattern.permute.xlu0 0
    %307 = vperm.xlu0 %306, %v92
    %v308 = vpop.permute.xlu0 %307
    %311 = vset.pattern.permute.xlu0 0
    %312 = vperm.xlu0 %311, %v93
    %v313 = vpop.permute.xlu0 %312
    %v315 = vmul.f32 %v238, %v219
    %v316 = vmul.f32 %v243, %v220
    %v317 = vmul.f32 %v248, %v221
    %v318 = vmul.f32 %v253, %v222
    %v319 = vmul.f32 %v258, %v223
    %v320 = vmul.f32 %v263, %v224
    %v321 = vmul.f32 %v268, %v225
    %v322 = vmul.f32 %v273, %v226
    %v323 = vmul.f32 %v278, %v227
    %v324 = vmul.f32 %v283, %v228
    %v325 = vmul.f32 %v288, %v229
    %v326 = vmul.f32 %v293, %v230
    %v327 = vmul.f32 %v298, %v231
    %v328 = vmul.f32 %v303, %v232
    %v329 = vmul.f32 %v308, %v233
    %v330 = vmul.f32 %v313, %v234
    %v331 = vand.u32 2147483647, %v315
    %v332 = vand.u32 2147483647, %v316
    %v333 = vand.u32 2147483647, %v317
    %v334 = vand.u32 2147483647, %v318
    %v335 = vand.u32 2147483647, %v319
    %v336 = vand.u32 2147483647, %v320
    %v337 = vand.u32 2147483647, %v321
    %v338 = vand.u32 2147483647, %v322
    %v339 = vand.u32 2147483647, %v323
    %v340 = vand.u32 2147483647, %v324
    %v341 = vand.u32 2147483647, %v325
    %v342 = vand.u32 2147483647, %v326
    %v343 = vand.u32 2147483647, %v327
    %v344 = vand.u32 2147483647, %v328
    %v345 = vand.u32 2147483647, %v329
    %v346 = vand.u32 2147483647, %v330
    %vm347 = vcmp.lt.f32.partialorder %v331, 0.11111111
    %vm348 = vcmp.lt.f32.partialorder %v332, 0.11111111
    %vm349 = vcmp.lt.f32.partialorder %v333, 0.11111111
    %vm350 = vcmp.lt.f32.partialorder %v334, 0.11111111
    %vm351 = vcmp.lt.f32.partialorder %v335, 0.11111111
    %vm352 = vcmp.lt.f32.partialorder %v336, 0.11111111
    %vm353 = vcmp.lt.f32.partialorder %v337, 0.11111111
    %vm354 = vcmp.lt.f32.partialorder %v338, 0.11111111
    %vm355 = vcmp.lt.f32.partialorder %v339, 0.11111111
    %vm356 = vcmp.lt.f32.partialorder %v340, 0.11111111
    %vm357 = vcmp.lt.f32.partialorder %v341, 0.11111111
    %vm358 = vcmp.lt.f32.partialorder %v342, 0.11111111
    %vm359 = vcmp.lt.f32.partialorder %v343, 0.11111111
    %vm360 = vcmp.lt.f32.partialorder %v344, 0.11111111
    %vm361 = vcmp.lt.f32.partialorder %v345, 0.11111111
    %vm362 = vcmp.lt.f32.partialorder %v346, 0.11111111
    %v363 = vmul.f32 %v315, 4.5
    %v364 = vmul.f32 %v316, 4.5
    %v365 = vmul.f32 %v317, 4.5
    %v366 = vmul.f32 %v318, 4.5
    %v367 = vmul.f32 %v319, 4.5
    %v368 = vmul.f32 %v320, 4.5
    %v369 = vmul.f32 %v321, 4.5
    %v370 = vmul.f32 %v322, 4.5
    %v371 = vmul.f32 %v323, 4.5
    %v372 = vmul.f32 %v324, 4.5
    %v373 = vmul.f32 %v325, 4.5
    %v374 = vmul.f32 %v326, 4.5
    %v375 = vmul.f32 %v327, 4.5
    %v376 = vmul.f32 %v328, 4.5
    %v377 = vmul.f32 %v329, 4.5
    %v378 = vmul.f32 %v330, 4.5
    %v379 = vmul.f32 %v363, %v315
    %v380 = vmul.f32 %v364, %v316
    %v381 = vmul.f32 %v365, %v317
    %v382 = vmul.f32 %v366, %v318
    %v383 = vmul.f32 %v367, %v319
    %v384 = vmul.f32 %v368, %v320
    %v385 = vmul.f32 %v369, %v321
    %v386 = vmul.f32 %v370, %v322
    %v387 = vmul.f32 %v371, %v323
    %v388 = vmul.f32 %v372, %v324
    %v389 = vmul.f32 %v373, %v325
    %v390 = vmul.f32 %v374, %v326
    %v391 = vmul.f32 %v375, %v327
    %v392 = vmul.f32 %v376, %v328
    %v393 = vmul.f32 %v377, %v329
    %v394 = vmul.f32 %v378, %v330
    %v395 = vsub.f32 %v331, 0.055555556
    %v396 = vsub.f32 %v332, 0.055555556
    %v397 = vsub.f32 %v333, 0.055555556
    %v398 = vsub.f32 %v334, 0.055555556
    %v399 = vsub.f32 %v335, 0.055555556
    %v400 = vsub.f32 %v336, 0.055555556
    %v401 = vsub.f32 %v337, 0.055555556
    %v402 = vsub.f32 %v338, 0.055555556
    %v403 = vsub.f32 %v339, 0.055555556
    %v404 = vsub.f32 %v340, 0.055555556
    %v405 = vsub.f32 %v341, 0.055555556
    %v406 = vsub.f32 %v342, 0.055555556
    %v407 = vsub.f32 %v343, 0.055555556
    %v408 = vsub.f32 %v344, 0.055555556
    %v409 = vsub.f32 %v345, 0.055555556
    %v410 = vsub.f32 %v346, 0.055555556
    %v411 = vsel %vm347, %v379, %v395
    %v412 = vsel %vm348, %v380, %v396
    %v413 = vsel %vm349, %v381, %v397
    %v414 = vsel %vm350, %v382, %v398
    %v415 = vsel %vm351, %v383, %v399
    %v416 = vsel %vm352, %v384, %v400
    %v417 = vsel %vm353, %v385, %v401
    %v418 = vsel %vm354, %v386, %v402
    %v419 = vsel %vm355, %v387, %v403
    %v420 = vsel %vm356, %v388, %v404
    %v421 = vsel %vm357, %v389, %v405
    %v422 = vsel %vm358, %v390, %v406
    %v423 = vsel %vm359, %v391, %v407
    %v424 = vsel %vm360, %v392, %v408
    %v425 = vsel %vm361, %v393, %v409
    %v426 = vsel %vm362, %v394, %v410
    %vm427 = vcmask 31744
    %v428 = vsel %vm427, %v411, 0.0
    %v429 = vsel %vm427, %v412, 0.0
    %v430 = vadd.f32 %v428, %v429
    %v431 = vsel %vm427, %v413, 0.0
    %v432 = vadd.f32 %v430, %v431
    %v433 = vsel %vm427, %v414, 0.0
    %v434 = vadd.f32 %v432, %v433
    %v435 = vsel %vm427, %v415, 0.0
    %v436 = vadd.f32 %v434, %v435
    %v437 = vsel %vm427, %v416, 0.0
    %v438 = vadd.f32 %v436, %v437
    %v439 = vsel %vm427, %v417, 0.0
    %v440 = vadd.f32 %v438, %v439
    %v441 = vsel %vm427, %v418, 0.0
    %v442 = vadd.f32 %v440, %v441
    %v443 = vsel %vm427, %v419, 0.0
    %v444 = vadd.f32 %v442, %v443
    %v445 = vsel %vm427, %v420, 0.0
    %v446 = vadd.f32 %v444, %v445
    %v447 = vsel %vm427, %v421, 0.0
    %v448 = vadd.f32 %v446, %v447
    %v449 = vsel %vm427, %v422, 0.0
    %v450 = vadd.f32 %v448, %v449
    %v451 = vsel %vm427, %v423, 0.0
    %v452 = vadd.f32 %v450, %v451
    %v453 = vsel %vm427, %v424, 0.0
    %v454 = vadd.f32 %v452, %v453
    %v455 = vsel %vm427, %v425, 0.0
    %v456 = vadd.f32 %v454, %v455
    %v457 = vsel %vm427, %v426, 0.0
    %v458 = vadd.f32 %v456, %v457
    %459 = vadd.xlane.f32.xlu0 %v458
    %v460 = vpop.xlane.xlu0 %459
    %v461 = vrot.slane %v460, 4
    %v462 = vadd.f32 %v460, %v461
    %v463 = vrot.slane %v462, 2
    %v464 = vadd.f32 %v462, %v463
    %v465 = vrot.slane %v464, 1
    %v466 = vadd.f32 %v464, %v465
    %s467 = vtos %v466
    %s468 = smul.f32 %s467, %s186
    %v469 = vld [vmem:[%s3] sm:$0xff]
    %v470 = vld [vmem:[%s3 + $0x8] sm:$0xff]
    %v471 = vld [vmem:[%s3 + $0x10] sm:$0xff]
    %v472 = vld [vmem:[%s3 + $0x18] sm:$0xff]
    %v473 = vld [vmem:[%s3 + $0x20] sm:$0xff]
    %v474 = vld [vmem:[%s3 + $0x28] sm:$0xff]
    %v475 = vld [vmem:[%s3 + $0x30] sm:$0xff]
    %v476 = vld [vmem:[%s3 + $0x38] sm:$0xff]
    %v477 = vld [vmem:[%s3 + $0x40] sm:$0xff]
    %v478 = vld [vmem:[%s3 + $0x48] sm:$0xff]
    %v479 = vld [vmem:[%s3 + $0x50] sm:$0xff]
    %v480 = vld [vmem:[%s3 + $0x58] sm:$0xff]
    %v481 = vld [vmem:[%s3 + $0x60] sm:$0xff]
    %v482 = vld [vmem:[%s3 + $0x68] sm:$0xff]
    %v483 = vld [vmem:[%s3 + $0x70] sm:$0xff]
    %v484 = vld [vmem:[%s3 + $0x78] sm:$0xff]
    %501 = vrot.lane.b32.xlu0 %v469, 127
    %v502 = vpop.permute.xlu0 %501
    %503 = vrot.lane.b32.xlu0 %v470, 127
    %v504 = vpop.permute.xlu0 %503
    %505 = vrot.lane.b32.xlu0 %v471, 127
    %v506 = vpop.permute.xlu0 %505
    %507 = vrot.lane.b32.xlu0 %v472, 127
    %v508 = vpop.permute.xlu0 %507
    %509 = vrot.lane.b32.xlu0 %v473, 127
    %v510 = vpop.permute.xlu0 %509
    %511 = vrot.lane.b32.xlu0 %v474, 127
    %v512 = vpop.permute.xlu0 %511
    %513 = vrot.lane.b32.xlu0 %v475, 127
    %v514 = vpop.permute.xlu0 %513
    %515 = vrot.lane.b32.xlu0 %v476, 127
    %v516 = vpop.permute.xlu0 %515
    %517 = vrot.lane.b32.xlu0 %v477, 127
    %v518 = vpop.permute.xlu0 %517
    %519 = vrot.lane.b32.xlu0 %v478, 127
    %v520 = vpop.permute.xlu0 %519
    %521 = vrot.lane.b32.xlu0 %v479, 127
    %v522 = vpop.permute.xlu0 %521
    %523 = vrot.lane.b32.xlu0 %v480, 127
    %v524 = vpop.permute.xlu0 %523
    %525 = vrot.lane.b32.xlu0 %v481, 127
    %v526 = vpop.permute.xlu0 %525
    %527 = vrot.lane.b32.xlu0 %v482, 127
    %v528 = vpop.permute.xlu0 %527
    %529 = vrot.lane.b32.xlu0 %v483, 127
    %v530 = vpop.permute.xlu0 %529
    %531 = vrot.lane.b32.xlu0 %v484, 127
    %v532 = vpop.permute.xlu0 %531
    %v549 = vmax.f32 %v469, %v502
    %v550 = vmax.f32 %v470, %v504
    %v551 = vmax.f32 %v471, %v506
    %v552 = vmax.f32 %v472, %v508
    %v553 = vmax.f32 %v473, %v510
    %v554 = vmax.f32 %v474, %v512
    %v555 = vmax.f32 %v475, %v514
    %v556 = vmax.f32 %v476, %v516
    %v557 = vmax.f32 %v477, %v518
    %v558 = vmax.f32 %v478, %v520
    %v559 = vmax.f32 %v479, %v522
    %v560 = vmax.f32 %v480, %v524
    %v561 = vmax.f32 %v481, %v526
    %v562 = vmax.f32 %v482, %v528
    %v563 = vmax.f32 %v483, %v530
    %v564 = vmax.f32 %v484, %v532
    %v565 = vsub.f32 %v469, %v502
    %v566 = vsub.f32 %v470, %v504
    %v567 = vsub.f32 %v471, %v506
    %v568 = vsub.f32 %v472, %v508
    %v569 = vsub.f32 %v473, %v510
    %v570 = vsub.f32 %v474, %v512
    %v571 = vsub.f32 %v475, %v514
    %v572 = vsub.f32 %v476, %v516
    %v573 = vsub.f32 %v477, %v518
    %v574 = vsub.f32 %v478, %v520
    %v575 = vsub.f32 %v479, %v522
    %v576 = vsub.f32 %v480, %v524
    %v577 = vsub.f32 %v481, %v526
    %v578 = vsub.f32 %v482, %v528
    %v579 = vsub.f32 %v483, %v530
    %v580 = vsub.f32 %v484, %v532
    %v581 = vand.u32 2147483647, %v565
    %v582 = vand.u32 2147483647, %v566
    %v583 = vand.u32 2147483647, %v567
    %v584 = vand.u32 2147483647, %v568
    %v585 = vand.u32 2147483647, %v569
    %v586 = vand.u32 2147483647, %v570
    %v587 = vand.u32 2147483647, %v571
    %v588 = vand.u32 2147483647, %v572
    %v589 = vand.u32 2147483647, %v573
    %v590 = vand.u32 2147483647, %v574
    %v591 = vand.u32 2147483647, %v575
    %v592 = vand.u32 2147483647, %v576
    %v593 = vand.u32 2147483647, %v577
    %v594 = vand.u32 2147483647, %v578
    %v595 = vand.u32 2147483647, %v579
    %v596 = vand.u32 2147483647, %v580
    %v597 = vsub.f32 0.0, %v581
    %v598 = vsub.f32 0.0, %v582
    %v599 = vsub.f32 0.0, %v583
    %v600 = vsub.f32 0.0, %v584
    %v601 = vsub.f32 0.0, %v585
    %v602 = vsub.f32 0.0, %v586
    %v603 = vsub.f32 0.0, %v587
    %v604 = vsub.f32 0.0, %v588
    %v605 = vsub.f32 0.0, %v589
    %v606 = vsub.f32 0.0, %v590
    %v607 = vsub.f32 0.0, %v591
    %v608 = vsub.f32 0.0, %v592
    %v609 = vsub.f32 0.0, %v593
    %v610 = vsub.f32 0.0, %v594
    %v611 = vsub.f32 0.0, %v595
    %v612 = vsub.f32 0.0, %v596
    %v613 = vmul.f32 %v597, 1.442695
    %v614 = vpow.pop %v613
    %v615 = vmul.f32 %v598, 1.442695
    %v616 = vpow.pop %v615
    %v617 = vmul.f32 %v599, 1.442695
    %v618 = vpow.pop %v617
    %v619 = vmul.f32 %v600, 1.442695
    %v620 = vpow.pop %v619
    %v621 = vmul.f32 %v601, 1.442695
    %v622 = vpow.pop %v621
    %v623 = vmul.f32 %v602, 1.442695
    %v624 = vpow.pop %v623
    %v625 = vmul.f32 %v603, 1.442695
    %v626 = vpow.pop %v625
    %v627 = vmul.f32 %v604, 1.442695
    %v628 = vpow.pop %v627
    %v629 = vmul.f32 %v605, 1.442695
    %v630 = vpow.pop %v629
    %v631 = vmul.f32 %v606, 1.442695
    %v632 = vpow.pop %v631
    %v633 = vmul.f32 %v607, 1.442695
    %v634 = vpow.pop %v633
    %v635 = vmul.f32 %v608, 1.442695
    %v636 = vpow.pop %v635
    %v637 = vmul.f32 %v609, 1.442695
    %v638 = vpow.pop %v637
    %v639 = vmul.f32 %v610, 1.442695
    %v640 = vpow.pop %v639
    %v641 = vmul.f32 %v611, 1.442695
    %v642 = vpow.pop %v641
    %v643 = vmul.f32 %v612, 1.442695
    %v644 = vpow.pop %v643
    %v645 = vadd.f32 %v614, 1.0
    %v646 = vadd.f32 %v616, 1.0
    %v647 = vadd.f32 %v618, 1.0
    %v648 = vadd.f32 %v620, 1.0
    %v649 = vadd.f32 %v622, 1.0
    %v650 = vadd.f32 %v624, 1.0
    %v651 = vadd.f32 %v626, 1.0
    %v652 = vadd.f32 %v628, 1.0
    %v653 = vadd.f32 %v630, 1.0
    %v654 = vadd.f32 %v632, 1.0
    %v655 = vadd.f32 %v634, 1.0
    %v656 = vadd.f32 %v636, 1.0
    %v657 = vadd.f32 %v638, 1.0
    %v658 = vadd.f32 %v640, 1.0
    %v659 = vadd.f32 %v642, 1.0
    %v660 = vadd.f32 %v644, 1.0
    %v661 = vlog2.pop %v645
    %v662 = vmul.f32 %v661, 0.6931472
    %v663 = vlog2.pop %v646
    %v664 = vmul.f32 %v663, 0.6931472
    %v665 = vlog2.pop %v647
    %v666 = vmul.f32 %v665, 0.6931472
    %v667 = vlog2.pop %v648
    %v668 = vmul.f32 %v667, 0.6931472
    %v669 = vlog2.pop %v649
    %v670 = vmul.f32 %v669, 0.6931472
    %v671 = vlog2.pop %v650
    %v672 = vmul.f32 %v671, 0.6931472
    %v673 = vlog2.pop %v651
    %v674 = vmul.f32 %v673, 0.6931472
    %v675 = vlog2.pop %v652
    %v676 = vmul.f32 %v675, 0.6931472
    %v677 = vlog2.pop %v653
    %v678 = vmul.f32 %v677, 0.6931472
    %v679 = vlog2.pop %v654
    %v680 = vmul.f32 %v679, 0.6931472
    %v681 = vlog2.pop %v655
    %v682 = vmul.f32 %v681, 0.6931472
    %v683 = vlog2.pop %v656
    %v684 = vmul.f32 %v683, 0.6931472
    %v685 = vlog2.pop %v657
    %v686 = vmul.f32 %v685, 0.6931472
    %v687 = vlog2.pop %v658
    %v688 = vmul.f32 %v687, 0.6931472
    %v689 = vlog2.pop %v659
    %v690 = vmul.f32 %v689, 0.6931472
    %v691 = vlog2.pop %v660
    %v692 = vmul.f32 %v691, 0.6931472
    %v693 = vadd.f32 %v549, %v662
    %v694 = vadd.f32 %v550, %v664
    %v695 = vadd.f32 %v551, %v666
    %v696 = vadd.f32 %v552, %v668
    %v697 = vadd.f32 %v553, %v670
    %v698 = vadd.f32 %v554, %v672
    %v699 = vadd.f32 %v555, %v674
    %v700 = vadd.f32 %v556, %v676
    %v701 = vadd.f32 %v557, %v678
    %v702 = vadd.f32 %v558, %v680
    %v703 = vadd.f32 %v559, %v682
    %v704 = vadd.f32 %v560, %v684
    %v705 = vadd.f32 %v561, %v686
    %v706 = vadd.f32 %v562, %v688
    %v707 = vadd.f32 %v563, %v690
    %v708 = vadd.f32 %v564, %v692
    %v709 = vsel %vm46, %v502, %v469
    %v710 = vsel %vm47, %v504, %v470
    %v711 = vsel %vm48, %v506, %v471
    %v712 = vsel %vm49, %v508, %v472
    %v713 = vsel %vm50, %v510, %v473
    %v714 = vsel %vm51, %v512, %v474
    %v715 = vsel %vm52, %v514, %v475
    %v716 = vsel %vm53, %v516, %v476
    %v717 = vsel %vm54, %v518, %v477
    %v718 = vsel %vm55, %v520, %v478
    %v719 = vsel %vm56, %v522, %v479
    %v720 = vsel %vm57, %v524, %v480
    %v721 = vsel %vm58, %v526, %v481
    %v722 = vsel %vm59, %v528, %v482
    %v723 = vsel %vm60, %v530, %v483
    %v724 = vsel %vm61, %v532, %v484
    %v725 = vsub.f32 %v693, %v709
    %v726 = vsub.f32 %v694, %v710
    %v727 = vsub.f32 %v695, %v711
    %v728 = vsub.f32 %v696, %v712
    %v729 = vsub.f32 %v697, %v713
    %v730 = vsub.f32 %v698, %v714
    %v731 = vsub.f32 %v699, %v715
    %v732 = vsub.f32 %v700, %v716
    %v733 = vsub.f32 %v701, %v717
    %v734 = vsub.f32 %v702, %v718
    %v735 = vsub.f32 %v703, %v719
    %v736 = vsub.f32 %v704, %v720
    %v737 = vsub.f32 %v705, %v721
    %v738 = vsub.f32 %v706, %v722
    %v739 = vsub.f32 %v707, %v723
    %v740 = vsub.f32 %v708, %v724
    %v741 = vmul.f32 %v725, %v126
    %v742 = vmul.f32 %v726, %v127
    %v743 = vmul.f32 %v727, %v128
    %v744 = vmul.f32 %v728, %v129
    %v745 = vmul.f32 %v729, %v130
    %v746 = vmul.f32 %v730, %v131
    %v747 = vmul.f32 %v731, %v132
    %v748 = vmul.f32 %v732, %v133
    %v749 = vmul.f32 %v733, %v134
    %v750 = vmul.f32 %v734, %v135
    %v751 = vmul.f32 %v735, %v136
    %v752 = vmul.f32 %v736, %v137
    %v753 = vmul.f32 %v737, %v138
    %v754 = vmul.f32 %v738, %v139
    %v755 = vmul.f32 %v739, %v140
    %v756 = vmul.f32 %v740, %v141
    %v757 = vsel %vm142, %v741, 0.0
    %v758 = vsel %vm142, %v742, 0.0
    %v759 = vadd.f32 %v757, %v758
    %v760 = vsel %vm142, %v743, 0.0
    %v761 = vadd.f32 %v759, %v760
    %v762 = vsel %vm142, %v744, 0.0
    %v763 = vadd.f32 %v761, %v762
    %v764 = vsel %vm142, %v745, 0.0
    %v765 = vadd.f32 %v763, %v764
    %v766 = vsel %vm142, %v746, 0.0
    %v767 = vadd.f32 %v765, %v766
    %v768 = vsel %vm142, %v747, 0.0
    %v769 = vadd.f32 %v767, %v768
    %v770 = vsel %vm142, %v748, 0.0
    %v771 = vadd.f32 %v769, %v770
    %v772 = vsel %vm142, %v749, 0.0
    %v773 = vadd.f32 %v771, %v772
    %v774 = vsel %vm142, %v750, 0.0
    %v775 = vadd.f32 %v773, %v774
    %v776 = vsel %vm142, %v751, 0.0
    %v777 = vadd.f32 %v775, %v776
    %v778 = vsel %vm142, %v752, 0.0
    %v779 = vadd.f32 %v777, %v778
    %v780 = vsel %vm142, %v753, 0.0
    %v781 = vadd.f32 %v779, %v780
    %v782 = vsel %vm142, %v754, 0.0
    %v783 = vadd.f32 %v781, %v782
    %v784 = vsel %vm142, %v755, 0.0
    %v785 = vadd.f32 %v783, %v784
    %v786 = vsel %vm142, %v756, 0.0
    %v787 = vadd.f32 %v785, %v786
    %788 = vadd.xlane.f32.xlu0 %v787
    %v789 = vpop.xlane.xlu0 %788
    %v790 = vrot.slane %v789, 4
    %v791 = vadd.f32 %v789, %v790
    %v792 = vrot.slane %v791, 2
    %v793 = vadd.f32 %v791, %v792
    %v794 = vrot.slane %v793, 1
    %v795 = vadd.f32 %v793, %v794
    %s796 = vtos %v795
    %s797 = smul.f32 %s796, %s186
    %v798 = vld [vmem:[%s6] sm:$0xff]
    %v799 = vld [vmem:[%s6 + $0x8] sm:$0xff]
    %v800 = vld [vmem:[%s6 + $0x10] sm:$0xff]
    %v801 = vld [vmem:[%s6 + $0x18] sm:$0xff]
    %vm802 = vcmp.gt.s32.totalorder %v798, 0
    %vm803 = vcmp.gt.s32.totalorder %v799, 0
    %vm804 = vcmp.gt.s32.totalorder %v800, 0
    %vm805 = vcmp.gt.s32.totalorder %v801, 0
    %v806 = vsel %vm802, 1, 0
    %v807 = vsel %vm803, 1, 0
    %v808 = vsel %vm804, 1, 0
    %v809 = vsel %vm805, 1, 0
    %v810 = vcvt.s32.f32 %v806
    %v811 = vcvt.s32.f32 %v807
    %v812 = vcvt.s32.f32 %v808
    %v813 = vcvt.s32.f32 %v809
    %vm814 = vcmp.ge.s32.totalorder %v798, 0
    %vm815 = vcmp.ge.s32.totalorder %v799, 0
    %vm816 = vcmp.ge.s32.totalorder %v800, 0
    %vm817 = vcmp.ge.s32.totalorder %v801, 0
    %v818 = vsel %vm814, 1, 0
    %v819 = vsel %vm815, 1, 0
    %v820 = vsel %vm816, 1, 0
    %v821 = vsel %vm817, 1, 0
    %v822 = vcvt.s32.f32 %v818
    %v823 = vcvt.s32.f32 %v819
    %v824 = vcvt.s32.f32 %v820
    %v825 = vcvt.s32.f32 %v821
    %v826 = vsel %vm142, %v822, 0.0
    %v827 = vsel %vm142, %v823, 0.0
    %v828 = vadd.f32 %v826, %v827
    %v829 = vsel %vm142, %v824, 0.0
    %v830 = vadd.f32 %v828, %v829
    %v831 = vsel %vm142, %v825, 0.0
    %v832 = vadd.f32 %v830, %v831
    %833 = vadd.xlane.f32.xlu0 %v832
    %v834 = vpop.xlane.xlu0 %833
    %v835 = vrot.slane %v834, 4
    %v836 = vadd.f32 %v834, %v835
    %v837 = vrot.slane %v836, 2
    %v838 = vadd.f32 %v836, %v837
    %v839 = vrot.slane %v838, 1
    %v840 = vadd.f32 %v838, %v839
    %s841 = vtos %v840
    %s842 = smax.f32 %s841, 1.0
    %v843 = vstv %s842
    %v844 = vrcp.pop %v843
    %s845 = vtos %v844
    %v846 = vld [vmem:[%s7] sm:$0xff]
    %v847 = vld [vmem:[%s7 + $0x8] sm:$0xff]
    %v848 = vld [vmem:[%s7 + $0x10] sm:$0xff]
    %v849 = vld [vmem:[%s7 + $0x18] sm:$0xff]
    %v850 = vlaneseq
    %v851 = vand.u32 %v850, 127
    %852 = vset.pattern.permute.xlu0 0
    %853 = vperm.xlu0 %852, %v798
    %v854 = vpop.permute.xlu0 %853
    %855 = vset.pattern.permute.xlu0 0
    %856 = vperm.xlu0 %855, %v799
    %v857 = vpop.permute.xlu0 %856
    %858 = vset.pattern.permute.xlu0 0
    %859 = vperm.xlu0 %858, %v800
    %v860 = vpop.permute.xlu0 %859
    %861 = vset.pattern.permute.xlu0 0
    %862 = vperm.xlu0 %861, %v801
    %v863 = vpop.permute.xlu0 %862
    %vm864 = vcmp.eq.s32.totalorder %v851, %v854
    %vm865 = vcmp.eq.s32.totalorder %v851, %v857
    %vm866 = vcmp.eq.s32.totalorder %v851, %v860
    %vm867 = vcmp.eq.s32.totalorder %v851, %v863
    %v868 = vsel %vm864, 1, 0
    %v869 = vsel %vm865, 1, 0
    %v870 = vsel %vm866, 1, 0
    %v871 = vsel %vm867, 1, 0
    %v872 = vcvt.s32.f32 %v868
    %v873 = vcvt.s32.f32 %v869
    %v874 = vcvt.s32.f32 %v870
    %v875 = vcvt.s32.f32 %v871
    %v876 = vld [vmem:[%s4] sm:$0xff]
    %v877 = vld [vmem:[%s4 + $0x8] sm:$0xff]
    %v878 = vld [vmem:[%s4 + $0x10] sm:$0xff]
    %v879 = vld [vmem:[%s4 + $0x18] sm:$0xff]
    %881 = vset.pattern.permute.xlu0 0
    %882 = vperm.xlu0 %881, %v872
    %v883 = vpop.permute.xlu0 %882
    %886 = vset.pattern.permute.xlu0 0
    %887 = vperm.xlu0 %886, %v873
    %v888 = vpop.permute.xlu0 %887
    %891 = vset.pattern.permute.xlu0 0
    %892 = vperm.xlu0 %891, %v874
    %v893 = vpop.permute.xlu0 %892
    %896 = vset.pattern.permute.xlu0 0
    %897 = vperm.xlu0 %896, %v875
    %v898 = vpop.permute.xlu0 %897
    %v900 = vmul.f32 %v883, %v876
    %v901 = vmul.f32 %v888, %v877
    %v902 = vmul.f32 %v893, %v878
    %v903 = vmul.f32 %v898, %v879
    %904 = vset.pattern.permute.xlu0 1
    %905 = vperm.xlu0 %904, %v872
    %v906 = vpop.permute.xlu0 %905
    %908 = vset.pattern.permute.xlu0 1
    %909 = vperm.xlu0 %908, %v873
    %v910 = vpop.permute.xlu0 %909
    %912 = vset.pattern.permute.xlu0 1
    %913 = vperm.xlu0 %912, %v874
    %v914 = vpop.permute.xlu0 %913
    %916 = vset.pattern.permute.xlu0 1
    %917 = vperm.xlu0 %916, %v875
    %v918 = vpop.permute.xlu0 %917
    %v920 = vmul.f32 %v906, %v876
    %v921 = vmul.f32 %v910, %v877
    %v922 = vmul.f32 %v914, %v878
    %v923 = vmul.f32 %v918, %v879
    %928 = vrot.lane.b32.xlu0 %v920, 124
    %v929 = vpop.permute.xlu0 %928
    %930 = vrot.lane.b32.xlu0 %v921, 124
    %v931 = vpop.permute.xlu0 %930
    %932 = vrot.lane.b32.xlu0 %v922, 124
    %v933 = vpop.permute.xlu0 %932
    %934 = vrot.lane.b32.xlu0 %v923, 124
    %v935 = vpop.permute.xlu0 %934
    %v940 = vadd.f32 %v900, %v929
    %v941 = vadd.f32 %v901, %v931
    %v942 = vadd.f32 %v902, %v933
    %v943 = vadd.f32 %v903, %v935
    %944 = vset.pattern.permute.xlu0 2
    %945 = vperm.xlu0 %944, %v872
    %v946 = vpop.permute.xlu0 %945
    %948 = vset.pattern.permute.xlu0 2
    %949 = vperm.xlu0 %948, %v873
    %v950 = vpop.permute.xlu0 %949
    %952 = vset.pattern.permute.xlu0 2
    %953 = vperm.xlu0 %952, %v874
    %v954 = vpop.permute.xlu0 %953
    %956 = vset.pattern.permute.xlu0 2
    %957 = vperm.xlu0 %956, %v875
    %v958 = vpop.permute.xlu0 %957
    %v960 = vmul.f32 %v946, %v876
    %v961 = vmul.f32 %v950, %v877
    %v962 = vmul.f32 %v954, %v878
    %v963 = vmul.f32 %v958, %v879
    %968 = vrot.lane.b32.xlu0 %v960, 120
    %v969 = vpop.permute.xlu0 %968
    %970 = vrot.lane.b32.xlu0 %v961, 120
    %v971 = vpop.permute.xlu0 %970
    %972 = vrot.lane.b32.xlu0 %v962, 120
    %v973 = vpop.permute.xlu0 %972
    %974 = vrot.lane.b32.xlu0 %v963, 120
    %v975 = vpop.permute.xlu0 %974
    %v980 = vadd.f32 %v940, %v969
    %v981 = vadd.f32 %v941, %v971
    %v982 = vadd.f32 %v942, %v973
    %v983 = vadd.f32 %v943, %v975
    %984 = vset.pattern.permute.xlu0 3
    %985 = vperm.xlu0 %984, %v872
    %v986 = vpop.permute.xlu0 %985
    %988 = vset.pattern.permute.xlu0 3
    %989 = vperm.xlu0 %988, %v873
    %v990 = vpop.permute.xlu0 %989
    %992 = vset.pattern.permute.xlu0 3
    %993 = vperm.xlu0 %992, %v874
    %v994 = vpop.permute.xlu0 %993
    %996 = vset.pattern.permute.xlu0 3
    %997 = vperm.xlu0 %996, %v875
    %v998 = vpop.permute.xlu0 %997
    %v1000 = vmul.f32 %v986, %v876
    %v1001 = vmul.f32 %v990, %v877
    %v1002 = vmul.f32 %v994, %v878
    %v1003 = vmul.f32 %v998, %v879
    %1008 = vrot.lane.b32.xlu0 %v1000, 116
    %v1009 = vpop.permute.xlu0 %1008
    %1010 = vrot.lane.b32.xlu0 %v1001, 116
    %v1011 = vpop.permute.xlu0 %1010
    %1012 = vrot.lane.b32.xlu0 %v1002, 116
    %v1013 = vpop.permute.xlu0 %1012
    %1014 = vrot.lane.b32.xlu0 %v1003, 116
    %v1015 = vpop.permute.xlu0 %1014
    %v1020 = vadd.f32 %v980, %v1009
    %v1021 = vadd.f32 %v981, %v1011
    %v1022 = vadd.f32 %v982, %v1013
    %v1023 = vadd.f32 %v983, %v1015
    %1024 = vset.pattern.permute.xlu0 4
    %1025 = vperm.xlu0 %1024, %v872
    %v1026 = vpop.permute.xlu0 %1025
    %1028 = vset.pattern.permute.xlu0 4
    %1029 = vperm.xlu0 %1028, %v873
    %v1030 = vpop.permute.xlu0 %1029
    %1032 = vset.pattern.permute.xlu0 4
    %1033 = vperm.xlu0 %1032, %v874
    %v1034 = vpop.permute.xlu0 %1033
    %1036 = vset.pattern.permute.xlu0 4
    %1037 = vperm.xlu0 %1036, %v875
    %v1038 = vpop.permute.xlu0 %1037
    %v1040 = vmul.f32 %v1026, %v876
    %v1041 = vmul.f32 %v1030, %v877
    %v1042 = vmul.f32 %v1034, %v878
    %v1043 = vmul.f32 %v1038, %v879
    %1048 = vrot.lane.b32.xlu0 %v1040, 112
    %v1049 = vpop.permute.xlu0 %1048
    %1050 = vrot.lane.b32.xlu0 %v1041, 112
    %v1051 = vpop.permute.xlu0 %1050
    %1052 = vrot.lane.b32.xlu0 %v1042, 112
    %v1053 = vpop.permute.xlu0 %1052
    %1054 = vrot.lane.b32.xlu0 %v1043, 112
    %v1055 = vpop.permute.xlu0 %1054
    %v1060 = vadd.f32 %v1020, %v1049
    %v1061 = vadd.f32 %v1021, %v1051
    %v1062 = vadd.f32 %v1022, %v1053
    %v1063 = vadd.f32 %v1023, %v1055
    %1064 = vset.pattern.permute.xlu0 5
    %1065 = vperm.xlu0 %1064, %v872
    %v1066 = vpop.permute.xlu0 %1065
    %1068 = vset.pattern.permute.xlu0 5
    %1069 = vperm.xlu0 %1068, %v873
    %v1070 = vpop.permute.xlu0 %1069
    %1072 = vset.pattern.permute.xlu0 5
    %1073 = vperm.xlu0 %1072, %v874
    %v1074 = vpop.permute.xlu0 %1073
    %1076 = vset.pattern.permute.xlu0 5
    %1077 = vperm.xlu0 %1076, %v875
    %v1078 = vpop.permute.xlu0 %1077
    %v1080 = vmul.f32 %v1066, %v876
    %v1081 = vmul.f32 %v1070, %v877
    %v1082 = vmul.f32 %v1074, %v878
    %v1083 = vmul.f32 %v1078, %v879
    %1088 = vrot.lane.b32.xlu0 %v1080, 108
    %v1089 = vpop.permute.xlu0 %1088
    %1090 = vrot.lane.b32.xlu0 %v1081, 108
    %v1091 = vpop.permute.xlu0 %1090
    %1092 = vrot.lane.b32.xlu0 %v1082, 108
    %v1093 = vpop.permute.xlu0 %1092
    %1094 = vrot.lane.b32.xlu0 %v1083, 108
    %v1095 = vpop.permute.xlu0 %1094
    %v1100 = vadd.f32 %v1060, %v1089
    %v1101 = vadd.f32 %v1061, %v1091
    %v1102 = vadd.f32 %v1062, %v1093
    %v1103 = vadd.f32 %v1063, %v1095
    %1104 = vset.pattern.permute.xlu0 6
    %1105 = vperm.xlu0 %1104, %v872
    %v1106 = vpop.permute.xlu0 %1105
    %1108 = vset.pattern.permute.xlu0 6
    %1109 = vperm.xlu0 %1108, %v873
    %v1110 = vpop.permute.xlu0 %1109
    %1112 = vset.pattern.permute.xlu0 6
    %1113 = vperm.xlu0 %1112, %v874
    %v1114 = vpop.permute.xlu0 %1113
    %1116 = vset.pattern.permute.xlu0 6
    %1117 = vperm.xlu0 %1116, %v875
    %v1118 = vpop.permute.xlu0 %1117
    %v1120 = vmul.f32 %v1106, %v876
    %v1121 = vmul.f32 %v1110, %v877
    %v1122 = vmul.f32 %v1114, %v878
    %v1123 = vmul.f32 %v1118, %v879
    %1128 = vrot.lane.b32.xlu0 %v1120, 104
    %v1129 = vpop.permute.xlu0 %1128
    %1130 = vrot.lane.b32.xlu0 %v1121, 104
    %v1131 = vpop.permute.xlu0 %1130
    %1132 = vrot.lane.b32.xlu0 %v1122, 104
    %v1133 = vpop.permute.xlu0 %1132
    %1134 = vrot.lane.b32.xlu0 %v1123, 104
    %v1135 = vpop.permute.xlu0 %1134
    %v1140 = vadd.f32 %v1100, %v1129
    %v1141 = vadd.f32 %v1101, %v1131
    %v1142 = vadd.f32 %v1102, %v1133
    %v1143 = vadd.f32 %v1103, %v1135
    %1144 = vset.pattern.permute.xlu0 7
    %1145 = vperm.xlu0 %1144, %v872
    %v1146 = vpop.permute.xlu0 %1145
    %1148 = vset.pattern.permute.xlu0 7
    %1149 = vperm.xlu0 %1148, %v873
    %v1150 = vpop.permute.xlu0 %1149
    %1152 = vset.pattern.permute.xlu0 7
    %1153 = vperm.xlu0 %1152, %v874
    %v1154 = vpop.permute.xlu0 %1153
    %1156 = vset.pattern.permute.xlu0 7
    %1157 = vperm.xlu0 %1156, %v875
    %v1158 = vpop.permute.xlu0 %1157
    %v1160 = vmul.f32 %v1146, %v876
    %v1161 = vmul.f32 %v1150, %v877
    %v1162 = vmul.f32 %v1154, %v878
    %v1163 = vmul.f32 %v1158, %v879
    %1168 = vrot.lane.b32.xlu0 %v1160, 100
    %v1169 = vpop.permute.xlu0 %1168
    %1170 = vrot.lane.b32.xlu0 %v1161, 100
    %v1171 = vpop.permute.xlu0 %1170
    %1172 = vrot.lane.b32.xlu0 %v1162, 100
    %v1173 = vpop.permute.xlu0 %1172
    %1174 = vrot.lane.b32.xlu0 %v1163, 100
    %v1175 = vpop.permute.xlu0 %1174
    %v1180 = vadd.f32 %v1140, %v1169
    %v1181 = vadd.f32 %v1141, %v1171
    %v1182 = vadd.f32 %v1142, %v1173
    %v1183 = vadd.f32 %v1143, %v1175
    %1184 = vset.pattern.permute.xlu0 8
    %1185 = vperm.xlu0 %1184, %v872
    %v1186 = vpop.permute.xlu0 %1185
    %1188 = vset.pattern.permute.xlu0 8
    %1189 = vperm.xlu0 %1188, %v873
    %v1190 = vpop.permute.xlu0 %1189
    %1192 = vset.pattern.permute.xlu0 8
    %1193 = vperm.xlu0 %1192, %v874
    %v1194 = vpop.permute.xlu0 %1193
    %1196 = vset.pattern.permute.xlu0 8
    %1197 = vperm.xlu0 %1196, %v875
    %v1198 = vpop.permute.xlu0 %1197
    %v1200 = vmul.f32 %v1186, %v876
    %v1201 = vmul.f32 %v1190, %v877
    %v1202 = vmul.f32 %v1194, %v878
    %v1203 = vmul.f32 %v1198, %v879
    %1208 = vrot.lane.b32.xlu0 %v1200, 96
    %v1209 = vpop.permute.xlu0 %1208
    %1210 = vrot.lane.b32.xlu0 %v1201, 96
    %v1211 = vpop.permute.xlu0 %1210
    %1212 = vrot.lane.b32.xlu0 %v1202, 96
    %v1213 = vpop.permute.xlu0 %1212
    %1214 = vrot.lane.b32.xlu0 %v1203, 96
    %v1215 = vpop.permute.xlu0 %1214
    %v1220 = vadd.f32 %v1180, %v1209
    %v1221 = vadd.f32 %v1181, %v1211
    %v1222 = vadd.f32 %v1182, %v1213
    %v1223 = vadd.f32 %v1183, %v1215
    %1224 = vset.pattern.permute.xlu0 9
    %1225 = vperm.xlu0 %1224, %v872
    %v1226 = vpop.permute.xlu0 %1225
    %1228 = vset.pattern.permute.xlu0 9
    %1229 = vperm.xlu0 %1228, %v873
    %v1230 = vpop.permute.xlu0 %1229
    %1232 = vset.pattern.permute.xlu0 9
    %1233 = vperm.xlu0 %1232, %v874
    %v1234 = vpop.permute.xlu0 %1233
    %1236 = vset.pattern.permute.xlu0 9
    %1237 = vperm.xlu0 %1236, %v875
    %v1238 = vpop.permute.xlu0 %1237
    %v1240 = vmul.f32 %v1226, %v876
    %v1241 = vmul.f32 %v1230, %v877
    %v1242 = vmul.f32 %v1234, %v878
    %v1243 = vmul.f32 %v1238, %v879
    %1248 = vrot.lane.b32.xlu0 %v1240, 92
    %v1249 = vpop.permute.xlu0 %1248
    %1250 = vrot.lane.b32.xlu0 %v1241, 92
    %v1251 = vpop.permute.xlu0 %1250
    %1252 = vrot.lane.b32.xlu0 %v1242, 92
    %v1253 = vpop.permute.xlu0 %1252
    %1254 = vrot.lane.b32.xlu0 %v1243, 92
    %v1255 = vpop.permute.xlu0 %1254
    %v1260 = vadd.f32 %v1220, %v1249
    %v1261 = vadd.f32 %v1221, %v1251
    %v1262 = vadd.f32 %v1222, %v1253
    %v1263 = vadd.f32 %v1223, %v1255
    %1264 = vset.pattern.permute.xlu0 10
    %1265 = vperm.xlu0 %1264, %v872
    %v1266 = vpop.permute.xlu0 %1265
    %1268 = vset.pattern.permute.xlu0 10
    %1269 = vperm.xlu0 %1268, %v873
    %v1270 = vpop.permute.xlu0 %1269
    %1272 = vset.pattern.permute.xlu0 10
    %1273 = vperm.xlu0 %1272, %v874
    %v1274 = vpop.permute.xlu0 %1273
    %1276 = vset.pattern.permute.xlu0 10
    %1277 = vperm.xlu0 %1276, %v875
    %v1278 = vpop.permute.xlu0 %1277
    %v1280 = vmul.f32 %v1266, %v876
    %v1281 = vmul.f32 %v1270, %v877
    %v1282 = vmul.f32 %v1274, %v878
    %v1283 = vmul.f32 %v1278, %v879
    %1288 = vrot.lane.b32.xlu0 %v1280, 88
    %v1289 = vpop.permute.xlu0 %1288
    %1290 = vrot.lane.b32.xlu0 %v1281, 88
    %v1291 = vpop.permute.xlu0 %1290
    %1292 = vrot.lane.b32.xlu0 %v1282, 88
    %v1293 = vpop.permute.xlu0 %1292
    %1294 = vrot.lane.b32.xlu0 %v1283, 88
    %v1295 = vpop.permute.xlu0 %1294
    %v1300 = vadd.f32 %v1260, %v1289
    %v1301 = vadd.f32 %v1261, %v1291
    %v1302 = vadd.f32 %v1262, %v1293
    %v1303 = vadd.f32 %v1263, %v1295
    %v1304 = vld [vmem:[%s5] sm:$0xff]
    %v1305 = vld [vmem:[%s5 + $0x8] sm:$0xff]
    %v1306 = vld [vmem:[%s5 + $0x10] sm:$0xff]
    %v1307 = vld [vmem:[%s5 + $0x18] sm:$0xff]
    %v1308 = vsub.f32 %v1300, %v1304
    %v1309 = vsub.f32 %v1301, %v1305
    %v1310 = vsub.f32 %v1302, %v1306
    %v1311 = vsub.f32 %v1303, %v1307
    %1313 = vset.pattern.permute.xlu0 0
    %1314 = vperm.xlu0 %1313, %v810
    %v1315 = vpop.permute.xlu0 %1314
    %1318 = vset.pattern.permute.xlu0 0
    %1319 = vperm.xlu0 %1318, %v811
    %v1320 = vpop.permute.xlu0 %1319
    %1323 = vset.pattern.permute.xlu0 0
    %1324 = vperm.xlu0 %1323, %v812
    %v1325 = vpop.permute.xlu0 %1324
    %1328 = vset.pattern.permute.xlu0 0
    %1329 = vperm.xlu0 %1328, %v813
    %v1330 = vpop.permute.xlu0 %1329
    %v1332 = vmul.f32 %v1315, %v1308
    %v1333 = vmul.f32 %v1320, %v1309
    %v1334 = vmul.f32 %v1325, %v1310
    %v1335 = vmul.f32 %v1330, %v1311
    %v1336 = vand.u32 2147483647, %v1332
    %v1337 = vand.u32 2147483647, %v1333
    %v1338 = vand.u32 2147483647, %v1334
    %v1339 = vand.u32 2147483647, %v1335
    %vm1340 = vcmp.lt.f32.partialorder %v1336, 1.0
    %vm1341 = vcmp.lt.f32.partialorder %v1337, 1.0
    %vm1342 = vcmp.lt.f32.partialorder %v1338, 1.0
    %vm1343 = vcmp.lt.f32.partialorder %v1339, 1.0
    %v1344 = vmul.f32 %v1332, 0.5
    %v1345 = vmul.f32 %v1333, 0.5
    %v1346 = vmul.f32 %v1334, 0.5
    %v1347 = vmul.f32 %v1335, 0.5
    %v1348 = vmul.f32 %v1344, %v1332
    %v1349 = vmul.f32 %v1345, %v1333
    %v1350 = vmul.f32 %v1346, %v1334
    %v1351 = vmul.f32 %v1347, %v1335
    %v1352 = vsub.f32 %v1336, 0.5
    %v1353 = vsub.f32 %v1337, 0.5
    %v1354 = vsub.f32 %v1338, 0.5
    %v1355 = vsub.f32 %v1339, 0.5
    %v1356 = vsel %vm1340, %v1348, %v1352
    %v1357 = vsel %vm1341, %v1349, %v1353
    %v1358 = vsel %vm1342, %v1350, %v1354
    %v1359 = vsel %vm1343, %v1351, %v1355
    %v1360 = vsel %vm427, %v1356, 0.0
    %v1361 = vsel %vm427, %v1357, 0.0
    %v1362 = vadd.f32 %v1360, %v1361
    %v1363 = vsel %vm427, %v1358, 0.0
    %v1364 = vadd.f32 %v1362, %v1363
    %v1365 = vsel %vm427, %v1359, 0.0
    %v1366 = vadd.f32 %v1364, %v1365
    %1367 = vadd.xlane.f32.xlu0 %v1366
    %v1368 = vpop.xlane.xlu0 %1367
    %v1369 = vrot.slane %v1368, 4
    %v1370 = vadd.f32 %v1368, %v1369
    %v1371 = vrot.slane %v1370, 2
    %v1372 = vadd.f32 %v1370, %v1371
    %v1373 = vrot.slane %v1372, 1
    %v1374 = vadd.f32 %v1372, %v1373
    %s1375 = vtos %v1374
    %s1376 = smul.f32 %s1375, %s845
    %vm1377 = vcmask 89088
    %v1378 = vsel %vm1377, %v846, -inf
    %1379 = vmax.xlane.f32.xlu0 %v1378
    %v1380 = vpop.xlane.xlu0 %1379
    %v1381 = vsel %vm1377, %v847, -inf
    %1382 = vmax.xlane.f32.xlu0 %v1381
    %v1383 = vpop.xlane.xlu0 %1382
    %v1384 = vsel %vm1377, %v848, -inf
    %1385 = vmax.xlane.f32.xlu0 %v1384
    %v1386 = vpop.xlane.xlu0 %1385
    %v1387 = vsel %vm1377, %v849, -inf
    %1388 = vmax.xlane.f32.xlu0 %v1387
    %v1389 = vpop.xlane.xlu0 %1388
    %v1390 = vsub.f32 %v846, %v1380
    %v1391 = vsub.f32 %v847, %v1383
    %v1392 = vsub.f32 %v848, %v1386
    %v1393 = vsub.f32 %v849, %v1389
    %v1394 = vmul.f32 %v1390, 1.442695
    %v1395 = vpow.pop %v1394
    %v1396 = vmul.f32 %v1391, 1.442695
    %v1397 = vpow.pop %v1396
    %v1398 = vmul.f32 %v1392, 1.442695
    %v1399 = vpow.pop %v1398
    %v1400 = vmul.f32 %v1393, 1.442695
    %v1401 = vpow.pop %v1400
    %v1402 = vsel %vm1377, %v1395, 0.0
    %1403 = vadd.xlane.f32.xlu0 %v1402
    %v1404 = vpop.xlane.xlu0 %1403
    %v1405 = vsel %vm1377, %v1397, 0.0
    %1406 = vadd.xlane.f32.xlu0 %v1405
    %v1407 = vpop.xlane.xlu0 %1406
    %v1408 = vsel %vm1377, %v1399, 0.0
    %1409 = vadd.xlane.f32.xlu0 %v1408
    %v1410 = vpop.xlane.xlu0 %1409
    %v1411 = vsel %vm1377, %v1401, 0.0
    %1412 = vadd.xlane.f32.xlu0 %v1411
    %v1413 = vpop.xlane.xlu0 %1412
    %v1414 = vlog2.pop %v1404
    %v1415 = vmul.f32 %v1414, 0.6931472
    %v1416 = vlog2.pop %v1407
    %v1417 = vmul.f32 %v1416, 0.6931472
    %v1418 = vlog2.pop %v1410
    %v1419 = vmul.f32 %v1418, 0.6931472
    %v1420 = vlog2.pop %v1413
    %v1421 = vmul.f32 %v1420, 0.6931472
    %v1422 = vadd.f32 %v1380, %v1415
    %v1423 = vadd.f32 %v1383, %v1417
    %v1424 = vadd.f32 %v1386, %v1419
    %v1425 = vadd.f32 %v1389, %v1421
    %v1426 = vmul.f32 %v872, %v846
    %v1427 = vmul.f32 %v873, %v847
    %v1428 = vmul.f32 %v874, %v848
    %v1429 = vmul.f32 %v875, %v849
    %v1430 = vsel %vm1377, %v1426, 0.0
    %1431 = vadd.xlane.f32.xlu0 %v1430
    %v1432 = vpop.xlane.xlu0 %1431
    %v1433 = vsel %vm1377, %v1427, 0.0
    %1434 = vadd.xlane.f32.xlu0 %v1433
    %v1435 = vpop.xlane.xlu0 %1434
    %v1436 = vsel %vm1377, %v1428, 0.0
    %1437 = vadd.xlane.f32.xlu0 %v1436
    %v1438 = vpop.xlane.xlu0 %1437
    %v1439 = vsel %vm1377, %v1429, 0.0
    %1440 = vadd.xlane.f32.xlu0 %v1439
    %v1441 = vpop.xlane.xlu0 %1440
    %v1442 = vsub.f32 %v1422, %v1432
    %v1443 = vsub.f32 %v1423, %v1435
    %v1444 = vsub.f32 %v1424, %v1438
    %v1445 = vsub.f32 %v1425, %v1441
    %v1446 = vmul.f32 %v1442, %v822
    %v1447 = vmul.f32 %v1443, %v823
    %v1448 = vmul.f32 %v1444, %v824
    %v1449 = vmul.f32 %v1445, %v825
    %v1450 = vsel %vm142, %v1446, 0.0
    %v1451 = vsel %vm142, %v1447, 0.0
    %v1452 = vadd.f32 %v1450, %v1451
    %v1453 = vsel %vm142, %v1448, 0.0
    %v1454 = vadd.f32 %v1452, %v1453
    %v1455 = vsel %vm142, %v1449, 0.0
    %v1456 = vadd.f32 %v1454, %v1455
    %1457 = vadd.xlane.f32.xlu0 %v1456
    %v1458 = vpop.xlane.xlu0 %1457
    %v1459 = vrot.slane %v1458, 4
    %v1460 = vadd.f32 %v1458, %v1459
    %v1461 = vrot.slane %v1460, 2
    %v1462 = vadd.f32 %v1460, %v1461
    %v1463 = vrot.slane %v1462, 1
    %v1464 = vadd.f32 %v1462, %v1463
    %s1465 = vtos %v1464
    %s1466 = smul.f32 %s1465, %s845
    %s1467 = sadd.f32 %s468, %s797
    %s1468 = sadd.f32 %s1467, %s1376
    %s1469 = sadd.f32 %s1468, %s1466
    %s1470 = scalar_lea.smem [#allocation2], 0
    %1471 = sst [smem:[%s1470]] %s468
    %s1472 = scalar_lea.smem [#allocation2], 1
    %1473 = sst [smem:[%s1472]] %s797
    %s1474 = scalar_lea.smem [#allocation2], 2
    %1475 = sst [smem:[%s1474]] %s1376
    %s1476 = scalar_lea.smem [#allocation2], 3
    %1477 = sst [smem:[%s1476]] %s1466
    %s1478 = scalar_lea.smem [#allocation2], 4
    %1479 = sst [smem:[%s1478]] %s1469
    // Predicated region
    $region34: #{tpu_custom_call.1} parent=1 // pred_check
      _
    $region35: #{tpu_custom_call.1} parent=1 // pred_check_branch
      %1481 = sbr.rel (0) target = $region37
    $region36: #{tpu_custom_call.1} parent=1 // pred_region
      %s1483 = ssub.s32 16, 16
      %1484 = vsyncadd [#allocation3], %s1483
      %1487 = dma.smem_to_hbm [#allocation2], 16, %s8, [#allocation3]
    $region37: #{tpu_custom_call.1} parent=1 // pred_fallthru
      _
    // Predicated region
    $region38: #{tpu_custom_call.1} parent=1 // pred_check
      _
    $region39: #{tpu_custom_call.1} parent=1 // pred_check_branch
      %1489 = sbr.rel (0) target = $region41
    $region40: #{tpu_custom_call.1} parent=1 // pred_region
      %1490 = dma.done [#allocation3], 16
    $region41: #{tpu_custom_call.1} parent=1 // pred_fallthru
      _
    %1491 = sfence
    %1492 = vsyncpa [#allocation3], 1

</llo_original>
